<compile_context>
chip_gen: v5e
topology: v5e:2x2
jax: 0.10.0
libtpu: 0.0.40
codegen_flags: <defaults>
</compile_context>

<pallas_src>
import functools

import jax
import jax.numpy as jnp
import numpy as np
from jax.experimental import pallas as pl
from jax.experimental.pallas import tpu as pltpu

BRANCH = 3
IN_DIM = 512
HID_DIM = 256
FUSED_HID = BRANCH * HID_DIM  # 768


def branched_control_kernel(joint_ref, cmd_ref, w1_ref, s1_ref, b1_ref,
                            w2_ref, b2_ref, out_ref):
    # joint_ref: [tb, 512] f32       cmd_ref: [tb, 3] f32
    # w1_ref:   [512, 768] bf16 or int8 (narrow storage, dequant in-register)
    # s1_ref:   [1, 768]   f32 per-output-column dequant scale (ones for bf16)
    # b1_ref:   [1, 768]   f32
    # w2_ref:   [768, 3]   bf16 (block-diagonal)    b2_ref: [1, 3] f32
    # out_ref:  [1, tb]    f32 (lane-dense row)
    x = joint_ref[...].astype(jnp.bfloat16)        # in-kernel cast (free VPU op)
    w1 = w1_ref[...].astype(jnp.bfloat16)          # int8 -> bf16 dequant (no-op for bf16 storage)
    acc = jnp.dot(x, w1, preferred_element_type=jnp.float32)        # fused [tb,512]x[512,768] MXU matmul
    h = jnp.maximum(acc * s1_ref[...] + b1_ref[...], 0.0)           # scale + bias + ReLU (VPU)
    ys = jnp.dot(h.astype(jnp.bfloat16), w2_ref[...],
                 preferred_element_type=jnp.float32) + b2_ref[...]  # [tb, 3]
    sel = jnp.sum(cmd_ref[...] * ys, axis=1, keepdims=True)         # [tb, 1] cmd-weighted sum
    out_ref[...] = jnp.transpose(sel, (1, 0))                       # [1, tb] lane-dense store (XLU, idle slot)


def prepare_params(w1, b1, w2, b2, w1_format="bf16"):
    """One-time fusion of the 3 branch heads into lane-dense slabs (reuse per call).

    w1_format:
      "bf16": W1 stored bf16 (default).
      "int8": W1 stored int8 with per-output-column scales, dequantized to bf16
              inside the kernel (halves the dominant W1 HBM transfer).
    """
    # w1: [3, 512, 256], b1: [3, 1, 256], w2: [3, 256, 1], b2: [3, 1, 1]
    W1 = jnp.concatenate([w1[br] for br in range(BRANCH)], axis=1)       # [512, 768]
    B1 = jnp.concatenate([b1[br] for br in range(BRANCH)], axis=1)       # [1, 768]
    W2 = jnp.zeros((FUSED_HID, BRANCH), jnp.float32)                     # block-diagonal
    for br in range(BRANCH):
        W2 = W2.at[br * HID_DIM:(br + 1) * HID_DIM, br].set(w2[br, :, 0])
    B2 = b2.reshape(1, BRANCH)                                           # [1, 3]

    if w1_format == "int8":
        amax = jnp.max(jnp.abs(W1), axis=0, keepdims=True)               # [1, 768]
        S1 = jnp.where(amax > 0, amax / 127.0, 1.0).astype(jnp.float32)
        W1s = jnp.clip(jnp.round(W1 / S1), -127, 127).astype(jnp.int8)
    else:
        W1s = W1.astype(jnp.bfloat16)
        S1 = jnp.ones((1, FUSED_HID), jnp.float32)

    return (W1s, S1, B1.astype(jnp.float32), W2.astype(jnp.bfloat16),
            B2.astype(jnp.float32))


@functools.partial(jax.jit, static_argnames=("batch_tile",))
def branched_control(joint, cmd, fused_params, batch_tile=512):
    W1, S1, B1, W2, B2 = fused_params
    B = joint.shape[0]
    tb = B if B <= batch_tile else batch_tile
    grid = (pl.cdiv(B, tb),)

    joint = joint.astype(jnp.float32)   # no-op for f32 callers; bf16 cast is in-kernel
    cmd = cmd.astype(jnp.float32)

    batch_spec = lambda cols: pl.BlockSpec((tb, cols), lambda i: (i, 0))
    const_spec = lambda shape: pl.BlockSpec(shape, lambda i: (0, 0))  # VMEM-resident weights

    out_row = pl.pallas_call(
        branched_control_kernel,
        out_shape=jax.ShapeDtypeStruct((1, B), jnp.float32),   # lane-dense output slab
        grid=grid,
        in_specs=[
            batch_spec(IN_DIM),        # joint tile
            batch_spec(BRANCH),        # cmd tile
            const_spec(W1.shape),      # fused layer-1 weights (bf16 or int8)
            const_spec(S1.shape),      # per-column dequant scales
            const_spec(B1.shape),
            const_spec(W2.shape),      # block-diagonal layer-2 weights (bf16)
            const_spec(B2.shape),
        ],
        out_specs=pl.BlockSpec((1, tb), lambda i: (0, i)),
        compiler_params=pltpu.CompilerParams(
            dimension_semantics=("parallel",)),
    )(joint, cmd, W1, S1, B1, W2, B2)
    return out_row.reshape(B, 1)


def init_params(key):
    """Deterministic synthetic init, PyTorch-Linear-like uniform bounds."""
    k1, k2, k3, k4 = jax.random.split(key, 4)
    bound1 = 1.0 / np.sqrt(IN_DIM)
    bound2 = 1.0 / np.sqrt(HID_DIM)
    w1 = jax.random.uniform(k1, (BRANCH, IN_DIM, HID_DIM), jnp.float32,
                            -bound1, bound1)
    b1 = jax.random.uniform(k2, (BRANCH, 1, HID_DIM), jnp.float32,
                            -bound1, bound1)
    w2 = jax.random.uniform(k3, (BRANCH, HID_DIM, 1), jnp.float32,
                            -bound2, bound2)
    b2 = jax.random.uniform(k4, (BRANCH, 1, 1), jnp.float32, -bound2, bound2)
    return w1, b1, w2, b2


def reference(joint, cmd, w1, b1, w2, b2):
    # Pure-JAX (f32) mirror of the PyTorch forward for verification.
    outs = []
    for br in range(BRANCH):
        h = jnp.maximum(joint @ w1[br] + b1[br], 0.0)
        outs.append(h @ w2[br] + b2[br])              # [B, 1]
    branch_outputs = jnp.concatenate(outs, axis=1)    # [B, 3] (stack + squeeze)
    return jnp.sum(cmd * branch_outputs, axis=1, keepdims=True)


if __name__ == "__main__":
    key = jax.random.PRNGKey(0)
    kp, kj, kc, kj2, kc2 = jax.random.split(key, 5)

    w1, b1, w2, b2 = init_params(kp)

    # --- small control-loop batch (B=8), bf16 weight storage -----------------
    B = 8
    joint = jax.random.normal(kj, (B, IN_DIM), jnp.float32)
    cmd = jax.random.uniform(kc, (B, BRANCH), jnp.float32)
    ref = reference(joint, cmd, w1, b1, w2, b2)

    fused_bf16 = prepare_params(w1, b1, w2, b2, w1_format="bf16")
    out = jax.block_until_ready(branched_control(joint, cmd, fused_bf16))
    np.testing.assert_allclose(np.asarray(out), np.asarray(ref),
                               rtol=2e-2, atol=2e-2)

    # --- int8 W1 storage (bandwidth-narrowed path, portable on v5e/v6e/v7x) --
    fused_int8 = prepare_params(w1, b1, w2, b2, w1_format="int8")
    out_q = jax.block_until_ready(branched_control(joint, cmd, fused_int8))
    np.testing.assert_allclose(np.asarray(out_q), np.asarray(ref),
                               rtol=3e-2, atol=3e-2)

    # --- ragged batch: B not a multiple of 8 nor of the tile -----------------
    Br = 300
    joint_r = jax.random.normal(kj2, (Br, IN_DIM), jnp.float32)
    cmd_r = jax.random.uniform(kc2, (Br, BRANCH), jnp.float32)
    ref_r = reference(joint_r, cmd_r, w1, b1, w2, b2)
    out_r = jax.block_until_ready(
        branched_control(joint_r, cmd_r, fused_bf16, batch_tile=256))
    np.testing.assert_allclose(np.asarray(out_r), np.asarray(ref_r),
                               rtol=2e-2, atol=2e-2)

    print("KERNEL_OK")
</pallas_src>

<mosaic_0001>
module attributes {stable_mosaic.version = 11 : i64} {
  func.func @branched_control_kernel(%arg0: i32, %arg1: memref<8x512xf32, #tpu.memory_space<vmem>>, %arg2: memref<8x3xf32, #tpu.memory_space<vmem>>, %arg3: memref<512x768xbf16, #tpu.memory_space<vmem>>, %arg4: memref<1x768xf32, #tpu.memory_space<vmem>>, %arg5: memref<1x768xf32, #tpu.memory_space<vmem>>, %arg6: memref<768x3xbf16, #tpu.memory_space<vmem>>, %arg7: memref<1x3xf32, #tpu.memory_space<vmem>>, %arg8: memref<1x8xf32, #tpu.memory_space<vmem>>) attributes {dimension_semantics = [#tpu.dimension_semantics<parallel>], iteration_bounds = array<i64: 1>, scalar_prefetch = 0 : i64, scratch_operands = 0 : i64, tpu.core_type = #tpu.core_type<tc>, window_params = [{transform_indices = @transform_0, window_bounds = array<i64: 8, 512>}, {transform_indices = @transform_1, window_bounds = array<i64: 8, 3>}, {pipeline_mode = #tpu.pipeline_mode<synchronous>, transform_indices = @transform_2, window_bounds = array<i64: 512, 768>}, {pipeline_mode = #tpu.pipeline_mode<synchronous>, transform_indices = @transform_3, window_bounds = array<i64: 1, 768>}, {pipeline_mode = #tpu.pipeline_mode<synchronous>, transform_indices = @transform_4, window_bounds = array<i64: 1, 768>}, {pipeline_mode = #tpu.pipeline_mode<synchronous>, transform_indices = @transform_5, window_bounds = array<i64: 768, 3>}, {pipeline_mode = #tpu.pipeline_mode<synchronous>, transform_indices = @transform_6, window_bounds = array<i64: 1, 3>}, {transform_indices = @transform_7, window_bounds = array<i64: 1, 8>}]} {
    %c0 = arith.constant 0 : index
    %c0_0 = arith.constant 0 : index
    %0 = vector.load %arg1[%c0, %c0_0] : memref<8x512xf32, #tpu.memory_space<vmem>>, vector<8x512xf32>
    %1 = arith.truncf %0 : vector<8x512xf32> to vector<8x512xbf16>
    %c0_1 = arith.constant 0 : index
    %c0_2 = arith.constant 0 : index
    %2 = vector.load %arg3[%c0_1, %c0_2] : memref<512x768xbf16, #tpu.memory_space<vmem>>, vector<512x768xbf16>
    %cst = arith.constant dense<0.000000e+00> : vector<8x768xf32>
    %3 = tpu.matmul %1, %2, %cst {dimension_numbers = #tpu.dot_dimension_numbers<[1], [0], [0], [1], [0, 0, 1, 1], [], []>} : vector<8x512xbf16>, vector<512x768xbf16>, vector<8x768xf32> -> vector<8x768xf32>
    %c0_3 = arith.constant 0 : index
    %c0_4 = arith.constant 0 : index
    %4 = vector.load %arg4[%c0_3, %c0_4] : memref<1x768xf32, #tpu.memory_space<vmem>>, vector<1x768xf32>
    %5 = vector.broadcast %4 : vector<1x768xf32> to vector<8x768xf32>
    %6 = arith.mulf %3, %5 : vector<8x768xf32>
    %c0_5 = arith.constant 0 : index
    %c0_6 = arith.constant 0 : index
    %7 = vector.load %arg5[%c0_5, %c0_6] : memref<1x768xf32, #tpu.memory_space<vmem>>, vector<1x768xf32>
    %8 = vector.broadcast %7 : vector<1x768xf32> to vector<8x768xf32>
    %9 = arith.addf %6, %8 : vector<8x768xf32>
    %cst_7 = arith.constant 0.000000e+00 : f32
    %10 = vector.broadcast %cst_7 : f32 to vector<8x768xf32>
    %11 = arith.maximumf %9, %10 : vector<8x768xf32>
    %12 = arith.truncf %11 : vector<8x768xf32> to vector<8x768xbf16>
    %c0_8 = arith.constant 0 : index
    %c0_9 = arith.constant 0 : index
    %13 = vector.load %arg6[%c0_8, %c0_9] : memref<768x3xbf16, #tpu.memory_space<vmem>>, vector<768x3xbf16>
    %cst_10 = arith.constant dense<0.000000e+00> : vector<8x3xf32>
    %14 = tpu.matmul %12, %13, %cst_10 {dimension_numbers = #tpu.dot_dimension_numbers<[1], [0], [0], [1], [0, 0, 1, 1], [], []>} : vector<8x768xbf16>, vector<768x3xbf16>, vector<8x3xf32> -> vector<8x3xf32>
    %c0_11 = arith.constant 0 : index
    %c0_12 = arith.constant 0 : index
    %15 = vector.load %arg7[%c0_11, %c0_12] : memref<1x3xf32, #tpu.memory_space<vmem>>, vector<1x3xf32>
    %16 = vector.broadcast %15 : vector<1x3xf32> to vector<8x3xf32>
    %17 = arith.addf %14, %16 : vector<8x3xf32>
    %c0_13 = arith.constant 0 : index
    %c0_14 = arith.constant 0 : index
    %18 = vector.load %arg2[%c0_13, %c0_14] : memref<8x3xf32, #tpu.memory_space<vmem>>, vector<8x3xf32>
    %19 = arith.mulf %18, %17 : vector<8x3xf32>
    %cst_15 = arith.constant dense<0.000000e+00> : vector<8xf32>
    %20 = vector.multi_reduction <add>, %19, %cst_15 [1] : vector<8x3xf32> to vector<8xf32>
    %21 = vector.shape_cast %20 : vector<8xf32> to vector<8x1xf32>
    %22 = tpu.transpose %21, [1, 0] : vector<8x1xf32> -> vector<1x8xf32>
    %c0_16 = arith.constant 0 : index
    %c0_17 = arith.constant 0 : index
    %23 = vector.load %arg8[%c0_16, %c0_17] : memref<1x8xf32, #tpu.memory_space<vmem>>, vector<1x8xf32>
    tpu.vector_store %arg8[%c0_16, %c0_17], %22 {strides = array<i32>} : memref<1x8xf32, #tpu.memory_space<vmem>>, vector<1x8xf32>,
    return
  }
  func.func @transform_0(%arg0: i32) -> (i32, i32) {
    %c0_i32 = arith.constant 0 : i32
    %c0_i32_0 = arith.constant 0 : i32
    return %arg0, %c0_i32 : i32, i32
  }
  func.func @transform_1(%arg0: i32) -> (i32, i32) {
    %c0_i32 = arith.constant 0 : i32
    %c0_i32_0 = arith.constant 0 : i32
    return %arg0, %c0_i32 : i32, i32
  }
  func.func @transform_2(%arg0: i32) -> (i32, i32) {
    %c0_i32 = arith.constant 0 : i32
    %c0_i32_0 = arith.constant 0 : i32
    %c0_i32_1 = arith.constant 0 : i32
    return %c0_i32, %c0_i32_0 : i32, i32
  }
  func.func @transform_3(%arg0: i32) -> (i32, i32) {
    %c0_i32 = arith.constant 0 : i32
    %c0_i32_0 = arith.constant 0 : i32
    %c0_i32_1 = arith.constant 0 : i32
    return %c0_i32, %c0_i32_0 : i32, i32
  }
  func.func @transform_4(%arg0: i32) -> (i32, i32) {
    %c0_i32 = arith.constant 0 : i32
    %c0_i32_0 = arith.constant 0 : i32
    %c0_i32_1 = arith.constant 0 : i32
    return %c0_i32, %c0_i32_0 : i32, i32
  }
  func.func @transform_5(%arg0: i32) -> (i32, i32) {
    %c0_i32 = arith.constant 0 : i32
    %c0_i32_0 = arith.constant 0 : i32
    %c0_i32_1 = arith.constant 0 : i32
    return %c0_i32, %c0_i32_0 : i32, i32
  }
  func.func @transform_6(%arg0: i32) -> (i32, i32) {
    %c0_i32 = arith.constant 0 : i32
    %c0_i32_0 = arith.constant 0 : i32
    %c0_i32_1 = arith.constant 0 : i32
    return %c0_i32, %c0_i32_0 : i32, i32
  }
  func.func @transform_7(%arg0: i32) -> (i32, i32) {
    %c0_i32 = arith.constant 0 : i32
    %c0_i32_0 = arith.constant 0 : i32
    return %c0_i32, %arg0 : i32, i32
  }
}

</mosaic_0001>

<llo_original>
// kernel: branched_control.1
$region0: #{branched_control.1}
  #allocation0 [shape = 'u32[]', space=smem, size = 0x4, offset = 0x4, fixed_abs, tag = 'smem constant byte address 0x4 - core index']
  #allocation1 [shape = 'u32[72,128]{1,0:T(1,128)}', space=vmem, size = 0x9000, scoped, tag = 'internal scratch']
  %s0 = inlined_call_operand.vmem [shape: f32[8,512], index: 0, kind: input, shape index: {}]
  %s1 = inlined_call_operand.vmem [shape: f32[8,3], index: 1, kind: input, shape index: {}]
  %s2 = inlined_call_operand.hbm [shape: bf16[512,768], index: 2, kind: input, shape index: {}]
  %s3 = inlined_call_operand.vmem [shape: f32[1,768], index: 3, kind: input, shape index: {}]
  %s4 = inlined_call_operand.vmem [shape: f32[1,768], index: 4, kind: input, shape index: {}]
  %s5 = inlined_call_operand.vmem [shape: bf16[768,3], index: 5, kind: input, shape index: {}]
  %s6 = inlined_call_operand.vmem [shape: f32[1,3], index: 6, kind: input, shape index: {}]
  %s7 = inlined_call_operand.hbm [shape: f32[1,8], index: 7, kind: output, shape index: {}]
  %s8 = sld [smem:[#allocation0]]
  $region42: #{branched_control.1} parent=0
    _
  %s10 = ssub.s32 1, %s8
  %s11 = scalar_select 0, %s10, %s8
  $region1: #{branched_control.1} parent=0
    #allocation2 [shape = 'u8[786432]{0}', space=vmem, size = 0xc0000, scoped, tag = 'input window, operand 2, single buffered']
    #allocation3 [shape = 's32[1]{0}', space=sflag, size = 0x4, scoped, tag = 'scoped memory for branched_control.1']
    #allocation4 [shape = 's32[1]{0}', space=sflag, size = 0x4, scoped, tag = 'scoped memory for branched_control.1']
    #allocation5 [shape = 'u8[512]{0}', space=vmem, size = 0x400, scoped, tag = 'output window, operand 0, single buffered']
    %12 = vsyncpa [#allocation3], 0
    %13 = vsyncpa [#allocation4], 0
    // Predicated region
    $region2: #{branched_control.1} parent=1 // pred_check
      _
    $region3: #{branched_control.1} parent=1 // pred_check_branch
      %15 = sbr.rel (0) target = $region5
    $region4: #{branched_control.1} parent=1 // pred_region
      _
    $region5: #{branched_control.1} parent=1 // pred_fallthru
      _
    // Predicated region
    $region6: #{branched_control.1} parent=1 // pred_check
      _
    $region7: #{branched_control.1} parent=1 // pred_check_branch
      %17 = sbr.rel (0) target = $region9
    $region8: #{branched_control.1} parent=1 // pred_region
      _
    $region9: #{branched_control.1} parent=1 // pred_fallthru
      _
    // Predicated region
    $region10: #{branched_control.1} parent=1 // pred_check
      _
    $region11: #{branched_control.1} parent=1 // pred_check_branch
      %19 = sbr.rel (0) target = $region13
    $region12: #{branched_control.1} parent=1 // pred_region
      %21 = vsyncadd [#allocation3], 0
      %s22 = sshll.u32 %s2, 4
      %s23 = int_to_ptr.hbm [resolvable:$true] %s22
      %s24 = sshll.u32 [#allocation2], 4
      %s25 = int_to_ptr.vmem [resolvable:$true] %s24
      %30 = dma.hbm_to_vmem [thread:$0]  %s23, 24576, %s25, [#allocation3], 384, 384, 24
    $region13: #{branched_control.1} parent=1 // pred_fallthru
      _
    // Predicated region
    $region14: #{branched_control.1} parent=1 // pred_check
      _
    $region15: #{branched_control.1} parent=1 // pred_check_branch
      %32 = sbr.rel (0) target = $region17
    $region16: #{branched_control.1} parent=1 // pred_region
      _
    $region17: #{branched_control.1} parent=1 // pred_fallthru
      _
    // Predicated region
    $region18: #{branched_control.1} parent=1 // pred_check
      _
    $region19: #{branched_control.1} parent=1 // pred_check_branch
      %34 = sbr.rel (0) target = $region21
    $region20: #{branched_control.1} parent=1 // pred_region
      _
    $region21: #{branched_control.1} parent=1 // pred_fallthru
      _
    // Predicated region
    $region22: #{branched_control.1} parent=1 // pred_check
      _
    $region23: #{branched_control.1} parent=1 // pred_check_branch
      %36 = sbr.rel (0) target = $region25
    $region24: #{branched_control.1} parent=1 // pred_region
      _
    $region25: #{branched_control.1} parent=1 // pred_fallthru
      _
    // Predicated region
    $region26: #{branched_control.1} parent=1 // pred_check
      _
    $region27: #{branched_control.1} parent=1 // pred_check_branch
      %38 = sbr.rel (0) target = $region29
    $region28: #{branched_control.1} parent=1 // pred_region
      _
    $region29: #{branched_control.1} parent=1 // pred_fallthru
      _
    // Predicated region
    $region30: #{branched_control.1} parent=1 // pred_check
      _
    $region31: #{branched_control.1} parent=1 // pred_check_branch
      %40 = sbr.rel (0) target = $region33
    $region32: #{branched_control.1} parent=1 // pred_region
      %42 = dma.done [#allocation3], 24576
    $region33: #{branched_control.1} parent=1 // pred_fallthru
      _
    %v43 = vld [vmem:[%s0] sm:$0xff]
    %v44 = vld [vmem:[%s0 + $0x8] sm:$0xff]
    %v45 = vld [vmem:[%s0 + $0x10] sm:$0xff]
    %v46 = vld [vmem:[%s0 + $0x18] sm:$0xff]
    %v47 = vpack.c.bf16 %v43, %v43
    %v48 = vpack.c.bf16 %v44, %v44
    %v49 = vpack.c.bf16 %v45, %v45
    %v50 = vpack.c.bf16 %v46, %v46
    %v51 = vld [vmem:[#allocation2] sm:$0xff]
    %v52 = vld [vmem:[#allocation2 + $0x8] sm:$0xff]
    %v53 = vld [vmem:[#allocation2 + $0x10] sm:$0xff]
    %v54 = vld [vmem:[#allocation2 + $0x18] sm:$0xff]
    %v55 = vld [vmem:[#allocation2 + $0x20] sm:$0xff]
    %v56 = vld [vmem:[#allocation2 + $0x28] sm:$0xff]
    %v57 = vld [vmem:[#allocation2 + $0x30] sm:$0xff]
    %v58 = vld [vmem:[#allocation2 + $0x38] sm:$0xff]
    %v59 = vld [vmem:[#allocation2 + $0x40] sm:$0xff]
    %v60 = vld [vmem:[#allocation2 + $0x48] sm:$0xff]
    %v61 = vld [vmem:[#allocation2 + $0x50] sm:$0xff]
    %v62 = vld [vmem:[#allocation2 + $0x58] sm:$0xff]
    %v63 = vld [vmem:[#allocation2 + $0x60] sm:$0xff]
    %v64 = vld [vmem:[#allocation2 + $0x68] sm:$0xff]
    %v65 = vld [vmem:[#allocation2 + $0x70] sm:$0xff]
    %v66 = vld [vmem:[#allocation2 + $0x78] sm:$0xff]
    %v67 = vld [vmem:[#allocation2 + $0x80] sm:$0xff]
    %v68 = vld [vmem:[#allocation2 + $0x88] sm:$0xff]
    %v69 = vld [vmem:[#allocation2 + $0x90] sm:$0xff]
    %v70 = vld [vmem:[#allocation2 + $0x98] sm:$0xff]
    %v71 = vld [vmem:[#allocation2 + $0xa0] sm:$0xff]
    %v72 = vld [vmem:[#allocation2 + $0xa8] sm:$0xff]
    %v73 = vld [vmem:[#allocation2 + $0xb0] sm:$0xff]
    %v74 = vld [vmem:[#allocation2 + $0xb8] sm:$0xff]
    %v75 = vld [vmem:[#allocation2 + $0xc0] sm:$0xff]
    %v76 = vld [vmem:[#allocation2 + $0xc8] sm:$0xff]
    %v77 = vld [vmem:[#allocation2 + $0xd0] sm:$0xff]
    %v78 = vld [vmem:[#allocation2 + $0xd8] sm:$0xff]
    %v79 = vld [vmem:[#allocation2 + $0xe0] sm:$0xff]
    %v80 = vld [vmem:[#allocation2 + $0xe8] sm:$0xff]
    %v81 = vld [vmem:[#allocation2 + $0xf0] sm:$0xff]
    %v82 = vld [vmem:[#allocation2 + $0xf8] sm:$0xff]
    %v83 = vld [vmem:[#allocation2 + $0x100] sm:$0xff]
    %v84 = vld [vmem:[#allocation2 + $0x108] sm:$0xff]
    %v85 = vld [vmem:[#allocation2 + $0x110] sm:$0xff]
    %v86 = vld [vmem:[#allocation2 + $0x118] sm:$0xff]
    %v87 = vld [vmem:[#allocation2 + $0x120] sm:$0xff]
    %v88 = vld [vmem:[#allocation2 + $0x128] sm:$0xff]
    %v89 = vld [vmem:[#allocation2 + $0x130] sm:$0xff]
    %v90 = vld [vmem:[#allocation2 + $0x138] sm:$0xff]
    %v91 = vld [vmem:[#allocation2 + $0x140] sm:$0xff]
    %v92 = vld [vmem:[#allocation2 + $0x148] sm:$0xff]
    %v93 = vld [vmem:[#allocation2 + $0x150] sm:$0xff]
    %v94 = vld [vmem:[#allocation2 + $0x158] sm:$0xff]
    %v95 = vld [vmem:[#allocation2 + $0x160] sm:$0xff]
    %v96 = vld [vmem:[#allocation2 + $0x168] sm:$0xff]
    %v97 = vld [vmem:[#allocation2 + $0x170] sm:$0xff]
    %v98 = vld [vmem:[#allocation2 + $0x178] sm:$0xff]
    %v99 = vld [vmem:[#allocation2 + $0x180] sm:$0xff]
    %v100 = vld [vmem:[#allocation2 + $0x188] sm:$0xff]
    %v101 = vld [vmem:[#allocation2 + $0x190] sm:$0xff]
    %v102 = vld [vmem:[#allocation2 + $0x198] sm:$0xff]
    %v103 = vld [vmem:[#allocation2 + $0x1a0] sm:$0xff]
    %v104 = vld [vmem:[#allocation2 + $0x1a8] sm:$0xff]
    %v105 = vld [vmem:[#allocation2 + $0x1b0] sm:$0xff]
    %v106 = vld [vmem:[#allocation2 + $0x1b8] sm:$0xff]
    %v107 = vld [vmem:[#allocation2 + $0x1c0] sm:$0xff]
    %v108 = vld [vmem:[#allocation2 + $0x1c8] sm:$0xff]
    %v109 = vld [vmem:[#allocation2 + $0x1d0] sm:$0xff]
    %v110 = vld [vmem:[#allocation2 + $0x1d8] sm:$0xff]
    %v111 = vld [vmem:[#allocation2 + $0x1e0] sm:$0xff]
    %v112 = vld [vmem:[#allocation2 + $0x1e8] sm:$0xff]
    %v113 = vld [vmem:[#allocation2 + $0x1f0] sm:$0xff]
    %v114 = vld [vmem:[#allocation2 + $0x1f8] sm:$0xff]
    %v115 = vld [vmem:[#allocation2 + $0x200] sm:$0xff]
    %v116 = vld [vmem:[#allocation2 + $0x208] sm:$0xff]
    %v117 = vld [vmem:[#allocation2 + $0x210] sm:$0xff]
    %v118 = vld [vmem:[#allocation2 + $0x218] sm:$0xff]
    %v119 = vld [vmem:[#allocation2 + $0x220] sm:$0xff]
    %v120 = vld [vmem:[#allocation2 + $0x228] sm:$0xff]
    %v121 = vld [vmem:[#allocation2 + $0x230] sm:$0xff]
    %v122 = vld [vmem:[#allocation2 + $0x238] sm:$0xff]
    %v123 = vld [vmem:[#allocation2 + $0x240] sm:$0xff]
    %v124 = vld [vmem:[#allocation2 + $0x248] sm:$0xff]
    %v125 = vld [vmem:[#allocation2 + $0x250] sm:$0xff]
    %v126 = vld [vmem:[#allocation2 + $0x258] sm:$0xff]
    %v127 = vld [vmem:[#allocation2 + $0x260] sm:$0xff]
    %v128 = vld [vmem:[#allocation2 + $0x268] sm:$0xff]
    %v129 = vld [vmem:[#allocation2 + $0x270] sm:$0xff]
    %v130 = vld [vmem:[#allocation2 + $0x278] sm:$0xff]
    %v131 = vld [vmem:[#allocation2 + $0x280] sm:$0xff]
    %v132 = vld [vmem:[#allocation2 + $0x288] sm:$0xff]
    %v133 = vld [vmem:[#allocation2 + $0x290] sm:$0xff]
    %v134 = vld [vmem:[#allocation2 + $0x298] sm:$0xff]
    %v135 = vld [vmem:[#allocation2 + $0x2a0] sm:$0xff]
    %v136 = vld [vmem:[#allocation2 + $0x2a8] sm:$0xff]
    %v137 = vld [vmem:[#allocation2 + $0x2b0] sm:$0xff]
    %v138 = vld [vmem:[#allocation2 + $0x2b8] sm:$0xff]
    %v139 = vld [vmem:[#allocation2 + $0x2c0] sm:$0xff]
    %v140 = vld [vmem:[#allocation2 + $0x2c8] sm:$0xff]
    %v141 = vld [vmem:[#allocation2 + $0x2d0] sm:$0xff]
    %v142 = vld [vmem:[#allocation2 + $0x2d8] sm:$0xff]
    %v143 = vld [vmem:[#allocation2 + $0x2e0] sm:$0xff]
    %v144 = vld [vmem:[#allocation2 + $0x2e8] sm:$0xff]
    %v145 = vld [vmem:[#allocation2 + $0x2f0] sm:$0xff]
    %v146 = vld [vmem:[#allocation2 + $0x2f8] sm:$0xff]
    %v147 = vld [vmem:[#allocation2 + $0x300] sm:$0xff]
    %v148 = vld [vmem:[#allocation2 + $0x308] sm:$0xff]
    %v149 = vld [vmem:[#allocation2 + $0x310] sm:$0xff]
    %v150 = vld [vmem:[#allocation2 + $0x318] sm:$0xff]
    %v151 = vld [vmem:[#allocation2 + $0x320] sm:$0xff]
    %v152 = vld [vmem:[#allocation2 + $0x328] sm:$0xff]
    %v153 = vld [vmem:[#allocation2 + $0x330] sm:$0xff]
    %v154 = vld [vmem:[#allocation2 + $0x338] sm:$0xff]
    %v155 = vld [vmem:[#allocation2 + $0x340] sm:$0xff]
    %v156 = vld [vmem:[#allocation2 + $0x348] sm:$0xff]
    %v157 = vld [vmem:[#allocation2 + $0x350] sm:$0xff]
    %v158 = vld [vmem:[#allocation2 + $0x358] sm:$0xff]
    %v159 = vld [vmem:[#allocation2 + $0x360] sm:$0xff]
    %v160 = vld [vmem:[#allocation2 + $0x368] sm:$0xff]
    %v161 = vld [vmem:[#allocation2 + $0x370] sm:$0xff]
    %v162 = vld [vmem:[#allocation2 + $0x378] sm:$0xff]
    %v163 = vld [vmem:[#allocation2 + $0x380] sm:$0xff]
    %v164 = vld [vmem:[#allocation2 + $0x388] sm:$0xff]
    %v165 = vld [vmem:[#allocation2 + $0x390] sm:$0xff]
    %v166 = vld [vmem:[#allocation2 + $0x398] sm:$0xff]
    %v167 = vld [vmem:[#allocation2 + $0x3a0] sm:$0xff]
    %v168 = vld [vmem:[#allocation2 + $0x3a8] sm:$0xff]
    %v169 = vld [vmem:[#allocation2 + $0x3b0] sm:$0xff]
    %v170 = vld [vmem:[#allocation2 + $0x3b8] sm:$0xff]
    %v171 = vld [vmem:[#allocation2 + $0x3c0] sm:$0xff]
    %v172 = vld [vmem:[#allocation2 + $0x3c8] sm:$0xff]
    %v173 = vld [vmem:[#allocation2 + $0x3d0] sm:$0xff]
    %v174 = vld [vmem:[#allocation2 + $0x3d8] sm:$0xff]
    %v175 = vld [vmem:[#allocation2 + $0x3e0] sm:$0xff]
    %v176 = vld [vmem:[#allocation2 + $0x3e8] sm:$0xff]
    %v177 = vld [vmem:[#allocation2 + $0x3f0] sm:$0xff]
    %v178 = vld [vmem:[#allocation2 + $0x3f8] sm:$0xff]
    %v179 = vld [vmem:[#allocation2 + $0x400] sm:$0xff]
    %v180 = vld [vmem:[#allocation2 + $0x408] sm:$0xff]
    %v181 = vld [vmem:[#allocation2 + $0x410] sm:$0xff]
    %v182 = vld [vmem:[#allocation2 + $0x418] sm:$0xff]
    %v183 = vld [vmem:[#allocation2 + $0x420] sm:$0xff]
    %v184 = vld [vmem:[#allocation2 + $0x428] sm:$0xff]
    %v185 = vld [vmem:[#allocation2 + $0x430] sm:$0xff]
    %v186 = vld [vmem:[#allocation2 + $0x438] sm:$0xff]
    %v187 = vld [vmem:[#allocation2 + $0x440] sm:$0xff]
    %v188 = vld [vmem:[#allocation2 + $0x448] sm:$0xff]
    %v189 = vld [vmem:[#allocation2 + $0x450] sm:$0xff]
    %v190 = vld [vmem:[#allocation2 + $0x458] sm:$0xff]
    %v191 = vld [vmem:[#allocation2 + $0x460] sm:$0xff]
    %v192 = vld [vmem:[#allocation2 + $0x468] sm:$0xff]
    %v193 = vld [vmem:[#allocation2 + $0x470] sm:$0xff]
    %v194 = vld [vmem:[#allocation2 + $0x478] sm:$0xff]
    %v195 = vld [vmem:[#allocation2 + $0x480] sm:$0xff]
    %v196 = vld [vmem:[#allocation2 + $0x488] sm:$0xff]
    %v197 = vld [vmem:[#allocation2 + $0x490] sm:$0xff]
    %v198 = vld [vmem:[#allocation2 + $0x498] sm:$0xff]
    %v199 = vld [vmem:[#allocation2 + $0x4a0] sm:$0xff]
    %v200 = vld [vmem:[#allocation2 + $0x4a8] sm:$0xff]
    %v201 = vld [vmem:[#allocation2 + $0x4b0] sm:$0xff]
    %v202 = vld [vmem:[#allocation2 + $0x4b8] sm:$0xff]
    %v203 = vld [vmem:[#allocation2 + $0x4c0] sm:$0xff]
    %v204 = vld [vmem:[#allocation2 + $0x4c8] sm:$0xff]
    %v205 = vld [vmem:[#allocation2 + $0x4d0] sm:$0xff]
    %v206 = vld [vmem:[#allocation2 + $0x4d8] sm:$0xff]
    %v207 = vld [vmem:[#allocation2 + $0x4e0] sm:$0xff]
    %v208 = vld [vmem:[#allocation2 + $0x4e8] sm:$0xff]
    %v209 = vld [vmem:[#allocation2 + $0x4f0] sm:$0xff]
    %v210 = vld [vmem:[#allocation2 + $0x4f8] sm:$0xff]
    %v211 = vld [vmem:[#allocation2 + $0x500] sm:$0xff]
    %v212 = vld [vmem:[#allocation2 + $0x508] sm:$0xff]
    %v213 = vld [vmem:[#allocation2 + $0x510] sm:$0xff]
    %v214 = vld [vmem:[#allocation2 + $0x518] sm:$0xff]
    %v215 = vld [vmem:[#allocation2 + $0x520] sm:$0xff]
    %v216 = vld [vmem:[#allocation2 + $0x528] sm:$0xff]
    %v217 = vld [vmem:[#allocation2 + $0x530] sm:$0xff]
    %v218 = vld [vmem:[#allocation2 + $0x538] sm:$0xff]
    %v219 = vld [vmem:[#allocation2 + $0x540] sm:$0xff]
    %v220 = vld [vmem:[#allocation2 + $0x548] sm:$0xff]
    %v221 = vld [vmem:[#allocation2 + $0x550] sm:$0xff]
    %v222 = vld [vmem:[#allocation2 + $0x558] sm:$0xff]
    %v223 = vld [vmem:[#allocation2 + $0x560] sm:$0xff]
    %v224 = vld [vmem:[#allocation2 + $0x568] sm:$0xff]
    %v225 = vld [vmem:[#allocation2 + $0x570] sm:$0xff]
    %v226 = vld [vmem:[#allocation2 + $0x578] sm:$0xff]
    %v227 = vld [vmem:[#allocation2 + $0x580] sm:$0xff]
    %v228 = vld [vmem:[#allocation2 + $0x588] sm:$0xff]
    %v229 = vld [vmem:[#allocation2 + $0x590] sm:$0xff]
    %v230 = vld [vmem:[#allocation2 + $0x598] sm:$0xff]
    %v231 = vld [vmem:[#allocation2 + $0x5a0] sm:$0xff]
    %v232 = vld [vmem:[#allocation2 + $0x5a8] sm:$0xff]
    %v233 = vld [vmem:[#allocation2 + $0x5b0] sm:$0xff]
    %v234 = vld [vmem:[#allocation2 + $0x5b8] sm:$0xff]
    %v235 = vld [vmem:[#allocation2 + $0x5c0] sm:$0xff]
    %v236 = vld [vmem:[#allocation2 + $0x5c8] sm:$0xff]
    %v237 = vld [vmem:[#allocation2 + $0x5d0] sm:$0xff]
    %v238 = vld [vmem:[#allocation2 + $0x5d8] sm:$0xff]
    %v239 = vld [vmem:[#allocation2 + $0x5e0] sm:$0xff]
    %v240 = vld [vmem:[#allocation2 + $0x5e8] sm:$0xff]
    %v241 = vld [vmem:[#allocation2 + $0x5f0] sm:$0xff]
    %v242 = vld [vmem:[#allocation2 + $0x5f8] sm:$0xff]
    %v435 = vunpack.c.l.b16 %v51
    %v436 = vunpack.c.h.b16 %v51
    %v437 = vunpack.c.l.b16 %v52
    %v438 = vunpack.c.h.b16 %v52
    %v439 = vunpack.c.l.b16 %v53
    %v440 = vunpack.c.h.b16 %v53
    %v441 = vunpack.c.l.b16 %v54
    %v442 = vunpack.c.h.b16 %v54
    %v443 = vunpack.c.l.b16 %v55
    %v444 = vunpack.c.h.b16 %v55
    %v445 = vunpack.c.l.b16 %v56
    %v446 = vunpack.c.h.b16 %v56
    %v447 = vunpack.c.l.b16 %v57
    %v448 = vunpack.c.h.b16 %v57
    %v449 = vunpack.c.l.b16 %v58
    %v450 = vunpack.c.h.b16 %v58
    %v451 = vunpack.c.l.b16 %v59
    %v452 = vunpack.c.h.b16 %v59
    %v453 = vunpack.c.l.b16 %v60
    %v454 = vunpack.c.h.b16 %v60
    %v455 = vunpack.c.l.b16 %v61
    %v456 = vunpack.c.h.b16 %v61
    %v457 = vunpack.c.l.b16 %v62
    %v458 = vunpack.c.h.b16 %v62
    %v459 = vunpack.c.l.b16 %v63
    %v460 = vunpack.c.h.b16 %v63
    %v461 = vunpack.c.l.b16 %v64
    %v462 = vunpack.c.h.b16 %v64
    %v463 = vunpack.c.l.b16 %v65
    %v464 = vunpack.c.h.b16 %v65
    %v465 = vunpack.c.l.b16 %v66
    %v466 = vunpack.c.h.b16 %v66
    %v467 = vunpack.c.l.b16 %v67
    %v468 = vunpack.c.h.b16 %v67
    %v469 = vunpack.c.l.b16 %v68
    %v470 = vunpack.c.h.b16 %v68
    %v471 = vunpack.c.l.b16 %v69
    %v472 = vunpack.c.h.b16 %v69
    %v473 = vunpack.c.l.b16 %v70
    %v474 = vunpack.c.h.b16 %v70
    %v475 = vunpack.c.l.b16 %v71
    %v476 = vunpack.c.h.b16 %v71
    %v477 = vunpack.c.l.b16 %v72
    %v478 = vunpack.c.h.b16 %v72
    %v479 = vunpack.c.l.b16 %v73
    %v480 = vunpack.c.h.b16 %v73
    %v481 = vunpack.c.l.b16 %v74
    %v482 = vunpack.c.h.b16 %v74
    %v483 = vunpack.c.l.b16 %v75
    %v484 = vunpack.c.h.b16 %v75
    %v485 = vunpack.c.l.b16 %v76
    %v486 = vunpack.c.h.b16 %v76
    %v487 = vunpack.c.l.b16 %v77
    %v488 = vunpack.c.h.b16 %v77
    %v489 = vunpack.c.l.b16 %v78
    %v490 = vunpack.c.h.b16 %v78
    %v491 = vunpack.c.l.b16 %v79
    %v492 = vunpack.c.h.b16 %v79
    %v493 = vunpack.c.l.b16 %v80
    %v494 = vunpack.c.h.b16 %v80
    %v495 = vunpack.c.l.b16 %v81
    %v496 = vunpack.c.h.b16 %v81
    %v497 = vunpack.c.l.b16 %v82
    %v498 = vunpack.c.h.b16 %v82
    %v499 = vunpack.c.l.b16 %v83
    %v500 = vunpack.c.h.b16 %v83
    %v501 = vunpack.c.l.b16 %v84
    %v502 = vunpack.c.h.b16 %v84
    %v503 = vunpack.c.l.b16 %v85
    %v504 = vunpack.c.h.b16 %v85
    %v505 = vunpack.c.l.b16 %v86
    %v506 = vunpack.c.h.b16 %v86
    %v507 = vunpack.c.l.b16 %v87
    %v508 = vunpack.c.h.b16 %v87
    %v509 = vunpack.c.l.b16 %v88
    %v510 = vunpack.c.h.b16 %v88
    %v511 = vunpack.c.l.b16 %v89
    %v512 = vunpack.c.h.b16 %v89
    %v513 = vunpack.c.l.b16 %v90
    %v514 = vunpack.c.h.b16 %v90
    %v515 = vunpack.c.l.b16 %v91
    %v516 = vunpack.c.h.b16 %v91
    %v517 = vunpack.c.l.b16 %v92
    %v518 = vunpack.c.h.b16 %v92
    %v519 = vunpack.c.l.b16 %v93
    %v520 = vunpack.c.h.b16 %v93
    %v521 = vunpack.c.l.b16 %v94
    %v522 = vunpack.c.h.b16 %v94
    %v523 = vunpack.c.l.b16 %v95
    %v524 = vunpack.c.h.b16 %v95
    %v525 = vunpack.c.l.b16 %v96
    %v526 = vunpack.c.h.b16 %v96
    %v527 = vunpack.c.l.b16 %v97
    %v528 = vunpack.c.h.b16 %v97
    %v529 = vunpack.c.l.b16 %v98
    %v530 = vunpack.c.h.b16 %v98
    %v531 = vunpack.c.l.b16 %v99
    %v532 = vunpack.c.h.b16 %v99
    %v533 = vunpack.c.l.b16 %v100
    %v534 = vunpack.c.h.b16 %v100
    %v535 = vunpack.c.l.b16 %v101
    %v536 = vunpack.c.h.b16 %v101
    %v537 = vunpack.c.l.b16 %v102
    %v538 = vunpack.c.h.b16 %v102
    %v539 = vunpack.c.l.b16 %v103
    %v540 = vunpack.c.h.b16 %v103
    %v541 = vunpack.c.l.b16 %v104
    %v542 = vunpack.c.h.b16 %v104
    %v543 = vunpack.c.l.b16 %v105
    %v544 = vunpack.c.h.b16 %v105
    %v545 = vunpack.c.l.b16 %v106
    %v546 = vunpack.c.h.b16 %v106
    %v547 = vunpack.c.l.b16 %v107
    %v548 = vunpack.c.h.b16 %v107
    %v549 = vunpack.c.l.b16 %v108
    %v550 = vunpack.c.h.b16 %v108
    %v551 = vunpack.c.l.b16 %v109
    %v552 = vunpack.c.h.b16 %v109
    %v553 = vunpack.c.l.b16 %v110
    %v554 = vunpack.c.h.b16 %v110
    %v555 = vunpack.c.l.b16 %v111
    %v556 = vunpack.c.h.b16 %v111
    %v557 = vunpack.c.l.b16 %v112
    %v558 = vunpack.c.h.b16 %v112
    %v559 = vunpack.c.l.b16 %v113
    %v560 = vunpack.c.h.b16 %v113
    %v561 = vunpack.c.l.b16 %v114
    %v562 = vunpack.c.h.b16 %v114
    %v563 = vunpack.c.l.b16 %v115
    %v564 = vunpack.c.h.b16 %v115
    %v565 = vunpack.c.l.b16 %v116
    %v566 = vunpack.c.h.b16 %v116
    %v567 = vunpack.c.l.b16 %v117
    %v568 = vunpack.c.h.b16 %v117
    %v569 = vunpack.c.l.b16 %v118
    %v570 = vunpack.c.h.b16 %v118
    %v571 = vunpack.c.l.b16 %v119
    %v572 = vunpack.c.h.b16 %v119
    %v573 = vunpack.c.l.b16 %v120
    %v574 = vunpack.c.h.b16 %v120
    %v575 = vunpack.c.l.b16 %v121
    %v576 = vunpack.c.h.b16 %v121
    %v577 = vunpack.c.l.b16 %v122
    %v578 = vunpack.c.h.b16 %v122
    %v579 = vunpack.c.l.b16 %v123
    %v580 = vunpack.c.h.b16 %v123
    %v581 = vunpack.c.l.b16 %v124
    %v582 = vunpack.c.h.b16 %v124
    %v583 = vunpack.c.l.b16 %v125
    %v584 = vunpack.c.h.b16 %v125
    %v585 = vunpack.c.l.b16 %v126
    %v586 = vunpack.c.h.b16 %v126
    %v587 = vunpack.c.l.b16 %v127
    %v588 = vunpack.c.h.b16 %v127
    %v589 = vunpack.c.l.b16 %v128
    %v590 = vunpack.c.h.b16 %v128
    %v591 = vunpack.c.l.b16 %v129
    %v592 = vunpack.c.h.b16 %v129
    %v593 = vunpack.c.l.b16 %v130
    %v594 = vunpack.c.h.b16 %v130
    %v595 = vunpack.c.l.b16 %v131
    %v596 = vunpack.c.h.b16 %v131
    %v597 = vunpack.c.l.b16 %v132
    %v598 = vunpack.c.h.b16 %v132
    %v599 = vunpack.c.l.b16 %v133
    %v600 = vunpack.c.h.b16 %v133
    %v601 = vunpack.c.l.b16 %v134
    %v602 = vunpack.c.h.b16 %v134
    %v603 = vunpack.c.l.b16 %v135
    %v604 = vunpack.c.h.b16 %v135
    %v605 = vunpack.c.l.b16 %v136
    %v606 = vunpack.c.h.b16 %v136
    %v607 = vunpack.c.l.b16 %v137
    %v608 = vunpack.c.h.b16 %v137
    %v609 = vunpack.c.l.b16 %v138
    %v610 = vunpack.c.h.b16 %v138
    %v611 = vunpack.c.l.b16 %v139
    %v612 = vunpack.c.h.b16 %v139
    %v613 = vunpack.c.l.b16 %v140
    %v614 = vunpack.c.h.b16 %v140
    %v615 = vunpack.c.l.b16 %v141
    %v616 = vunpack.c.h.b16 %v141
    %v617 = vunpack.c.l.b16 %v142
    %v618 = vunpack.c.h.b16 %v142
    %v619 = vunpack.c.l.b16 %v143
    %v620 = vunpack.c.h.b16 %v143
    %v621 = vunpack.c.l.b16 %v144
    %v622 = vunpack.c.h.b16 %v144
    %v623 = vunpack.c.l.b16 %v145
    %v624 = vunpack.c.h.b16 %v145
    %v625 = vunpack.c.l.b16 %v146
    %v626 = vunpack.c.h.b16 %v146
    %v627 = vunpack.c.l.b16 %v147
    %v628 = vunpack.c.h.b16 %v147
    %v629 = vunpack.c.l.b16 %v148
    %v630 = vunpack.c.h.b16 %v148
    %v631 = vunpack.c.l.b16 %v149
    %v632 = vunpack.c.h.b16 %v149
    %v633 = vunpack.c.l.b16 %v150
    %v634 = vunpack.c.h.b16 %v150
    %v635 = vunpack.c.l.b16 %v151
    %v636 = vunpack.c.h.b16 %v151
    %v637 = vunpack.c.l.b16 %v152
    %v638 = vunpack.c.h.b16 %v152
    %v639 = vunpack.c.l.b16 %v153
    %v640 = vunpack.c.h.b16 %v153
    %v641 = vunpack.c.l.b16 %v154
    %v642 = vunpack.c.h.b16 %v154
    %v643 = vunpack.c.l.b16 %v155
    %v644 = vunpack.c.h.b16 %v155
    %v645 = vunpack.c.l.b16 %v156
    %v646 = vunpack.c.h.b16 %v156
    %v647 = vunpack.c.l.b16 %v157
    %v648 = vunpack.c.h.b16 %v157
    %v649 = vunpack.c.l.b16 %v158
    %v650 = vunpack.c.h.b16 %v158
    %v651 = vunpack.c.l.b16 %v159
    %v652 = vunpack.c.h.b16 %v159
    %v653 = vunpack.c.l.b16 %v160
    %v654 = vunpack.c.h.b16 %v160
    %v655 = vunpack.c.l.b16 %v161
    %v656 = vunpack.c.h.b16 %v161
    %v657 = vunpack.c.l.b16 %v162
    %v658 = vunpack.c.h.b16 %v162
    %v659 = vunpack.c.l.b16 %v163
    %v660 = vunpack.c.h.b16 %v163
    %v661 = vunpack.c.l.b16 %v164
    %v662 = vunpack.c.h.b16 %v164
    %v663 = vunpack.c.l.b16 %v165
    %v664 = vunpack.c.h.b16 %v165
    %v665 = vunpack.c.l.b16 %v166
    %v666 = vunpack.c.h.b16 %v166
    %v667 = vunpack.c.l.b16 %v167
    %v668 = vunpack.c.h.b16 %v167
    %v669 = vunpack.c.l.b16 %v168
    %v670 = vunpack.c.h.b16 %v168
    %v671 = vunpack.c.l.b16 %v169
    %v672 = vunpack.c.h.b16 %v169
    %v673 = vunpack.c.l.b16 %v170
    %v674 = vunpack.c.h.b16 %v170
    %v675 = vunpack.c.l.b16 %v171
    %v676 = vunpack.c.h.b16 %v171
    %v677 = vunpack.c.l.b16 %v172
    %v678 = vunpack.c.h.b16 %v172
    %v679 = vunpack.c.l.b16 %v173
    %v680 = vunpack.c.h.b16 %v173
    %v681 = vunpack.c.l.b16 %v174
    %v682 = vunpack.c.h.b16 %v174
    %v683 = vunpack.c.l.b16 %v175
    %v684 = vunpack.c.h.b16 %v175
    %v685 = vunpack.c.l.b16 %v176
    %v686 = vunpack.c.h.b16 %v176
    %v687 = vunpack.c.l.b16 %v177
    %v688 = vunpack.c.h.b16 %v177
    %v689 = vunpack.c.l.b16 %v178
    %v690 = vunpack.c.h.b16 %v178
    %v691 = vunpack.c.l.b16 %v179
    %v692 = vunpack.c.h.b16 %v179
    %v693 = vunpack.c.l.b16 %v180
    %v694 = vunpack.c.h.b16 %v180
    %v695 = vunpack.c.l.b16 %v181
    %v696 = vunpack.c.h.b16 %v181
    %v697 = vunpack.c.l.b16 %v182
    %v698 = vunpack.c.h.b16 %v182
    %v699 = vunpack.c.l.b16 %v183
    %v700 = vunpack.c.h.b16 %v183
    %v701 = vunpack.c.l.b16 %v184
    %v702 = vunpack.c.h.b16 %v184
    %v703 = vunpack.c.l.b16 %v185
    %v704 = vunpack.c.h.b16 %v185
    %v705 = vunpack.c.l.b16 %v186
    %v706 = vunpack.c.h.b16 %v186
    %v707 = vunpack.c.l.b16 %v187
    %v708 = vunpack.c.h.b16 %v187
    %v709 = vunpack.c.l.b16 %v188
    %v710 = vunpack.c.h.b16 %v188
    %v711 = vunpack.c.l.b16 %v189
    %v712 = vunpack.c.h.b16 %v189
    %v713 = vunpack.c.l.b16 %v190
    %v714 = vunpack.c.h.b16 %v190
    %v715 = vunpack.c.l.b16 %v191
    %v716 = vunpack.c.h.b16 %v191
    %v717 = vunpack.c.l.b16 %v192
    %v718 = vunpack.c.h.b16 %v192
    %v719 = vunpack.c.l.b16 %v193
    %v720 = vunpack.c.h.b16 %v193
    %v721 = vunpack.c.l.b16 %v194
    %v722 = vunpack.c.h.b16 %v194
    %v723 = vunpack.c.l.b16 %v195
    %v724 = vunpack.c.h.b16 %v195
    %v725 = vunpack.c.l.b16 %v196
    %v726 = vunpack.c.h.b16 %v196
    %v727 = vunpack.c.l.b16 %v197
    %v728 = vunpack.c.h.b16 %v197
    %v729 = vunpack.c.l.b16 %v198
    %v730 = vunpack.c.h.b16 %v198
    %v731 = vunpack.c.l.b16 %v199
    %v732 = vunpack.c.h.b16 %v199
    %v733 = vunpack.c.l.b16 %v200
    %v734 = vunpack.c.h.b16 %v200
    %v735 = vunpack.c.l.b16 %v201
    %v736 = vunpack.c.h.b16 %v201
    %v737 = vunpack.c.l.b16 %v202
    %v738 = vunpack.c.h.b16 %v202
    %v739 = vunpack.c.l.b16 %v203
    %v740 = vunpack.c.h.b16 %v203
    %v741 = vunpack.c.l.b16 %v204
    %v742 = vunpack.c.h.b16 %v204
    %v743 = vunpack.c.l.b16 %v205
    %v744 = vunpack.c.h.b16 %v205
    %v745 = vunpack.c.l.b16 %v206
    %v746 = vunpack.c.h.b16 %v206
    %v747 = vunpack.c.l.b16 %v207
    %v748 = vunpack.c.h.b16 %v207
    %v749 = vunpack.c.l.b16 %v208
    %v750 = vunpack.c.h.b16 %v208
    %v751 = vunpack.c.l.b16 %v209
    %v752 = vunpack.c.h.b16 %v209
    %v753 = vunpack.c.l.b16 %v210
    %v754 = vunpack.c.h.b16 %v210
    %v755 = vunpack.c.l.b16 %v211
    %v756 = vunpack.c.h.b16 %v211
    %v757 = vunpack.c.l.b16 %v212
    %v758 = vunpack.c.h.b16 %v212
    %v759 = vunpack.c.l.b16 %v213
    %v760 = vunpack.c.h.b16 %v213
    %v761 = vunpack.c.l.b16 %v214
    %v762 = vunpack.c.h.b16 %v214
    %v763 = vunpack.c.l.b16 %v215
    %v764 = vunpack.c.h.b16 %v215
    %v765 = vunpack.c.l.b16 %v216
    %v766 = vunpack.c.h.b16 %v216
    %v767 = vunpack.c.l.b16 %v217
    %v768 = vunpack.c.h.b16 %v217
    %v769 = vunpack.c.l.b16 %v218
    %v770 = vunpack.c.h.b16 %v218
    %v771 = vunpack.c.l.b16 %v219
    %v772 = vunpack.c.h.b16 %v219
    %v773 = vunpack.c.l.b16 %v220
    %v774 = vunpack.c.h.b16 %v220
    %v775 = vunpack.c.l.b16 %v221
    %v776 = vunpack.c.h.b16 %v221
    %v777 = vunpack.c.l.b16 %v222
    %v778 = vunpack.c.h.b16 %v222
    %v779 = vunpack.c.l.b16 %v223
    %v780 = vunpack.c.h.b16 %v223
    %v781 = vunpack.c.l.b16 %v224
    %v782 = vunpack.c.h.b16 %v224
    %v783 = vunpack.c.l.b16 %v225
    %v784 = vunpack.c.h.b16 %v225
    %v785 = vunpack.c.l.b16 %v226
    %v786 = vunpack.c.h.b16 %v226
    %v787 = vunpack.c.l.b16 %v227
    %v788 = vunpack.c.h.b16 %v227
    %v789 = vunpack.c.l.b16 %v228
    %v790 = vunpack.c.h.b16 %v228
    %v791 = vunpack.c.l.b16 %v229
    %v792 = vunpack.c.h.b16 %v229
    %v793 = vunpack.c.l.b16 %v230
    %v794 = vunpack.c.h.b16 %v230
    %v795 = vunpack.c.l.b16 %v231
    %v796 = vunpack.c.h.b16 %v231
    %v797 = vunpack.c.l.b16 %v232
    %v798 = vunpack.c.h.b16 %v232
    %v799 = vunpack.c.l.b16 %v233
    %v800 = vunpack.c.h.b16 %v233
    %v801 = vunpack.c.l.b16 %v234
    %v802 = vunpack.c.h.b16 %v234
    %v803 = vunpack.c.l.b16 %v235
    %v804 = vunpack.c.h.b16 %v235
    %v805 = vunpack.c.l.b16 %v236
    %v806 = vunpack.c.h.b16 %v236
    %v807 = vunpack.c.l.b16 %v237
    %v808 = vunpack.c.h.b16 %v237
    %v809 = vunpack.c.l.b16 %v238
    %v810 = vunpack.c.h.b16 %v238
    %v811 = vunpack.c.l.b16 %v239
    %v812 = vunpack.c.h.b16 %v239
    %v813 = vunpack.c.l.b16 %v240
    %v814 = vunpack.c.h.b16 %v240
    %v815 = vunpack.c.l.b16 %v241
    %v816 = vunpack.c.h.b16 %v241
    %v817 = vunpack.c.l.b16 %v242
    %v818 = vunpack.c.h.b16 %v242
    %v819 = vpack.c.b16 %v441, %v435
    %v820 = vpack.c.b16 %v442, %v436
    %v821 = vpack.c.b16 %v443, %v437
    %v822 = vpack.c.b16 %v444, %v438
    %v823 = vpack.c.b16 %v445, %v439
    %v824 = vpack.c.b16 %v446, %v440
    %v825 = vpack.c.b16 %v453, %v447
    %v826 = vpack.c.b16 %v454, %v448
    %v827 = vpack.c.b16 %v455, %v449
    %v828 = vpack.c.b16 %v456, %v450
    %v829 = vpack.c.b16 %v457, %v451
    %v830 = vpack.c.b16 %v458, %v452
    %v831 = vpack.c.b16 %v465, %v459
    %v832 = vpack.c.b16 %v466, %v460
    %v833 = vpack.c.b16 %v467, %v461
    %v834 = vpack.c.b16 %v468, %v462
    %v835 = vpack.c.b16 %v469, %v463
    %v836 = vpack.c.b16 %v470, %v464
    %v837 = vpack.c.b16 %v477, %v471
    %v838 = vpack.c.b16 %v478, %v472
    %v839 = vpack.c.b16 %v479, %v473
    %v840 = vpack.c.b16 %v480, %v474
    %v841 = vpack.c.b16 %v481, %v475
    %v842 = vpack.c.b16 %v482, %v476
    %v843 = vpack.c.b16 %v489, %v483
    %v844 = vpack.c.b16 %v490, %v484
    %v845 = vpack.c.b16 %v491, %v485
    %v846 = vpack.c.b16 %v492, %v486
    %v847 = vpack.c.b16 %v493, %v487
    %v848 = vpack.c.b16 %v494, %v488
    %v849 = vpack.c.b16 %v501, %v495
    %v850 = vpack.c.b16 %v502, %v496
    %v851 = vpack.c.b16 %v503, %v497
    %v852 = vpack.c.b16 %v504, %v498
    %v853 = vpack.c.b16 %v505, %v499
    %v854 = vpack.c.b16 %v506, %v500
    %v855 = vpack.c.b16 %v513, %v507
    %v856 = vpack.c.b16 %v514, %v508
    %v857 = vpack.c.b16 %v515, %v509
    %v858 = vpack.c.b16 %v516, %v510
    %v859 = vpack.c.b16 %v517, %v511
    %v860 = vpack.c.b16 %v518, %v512
    %v861 = vpack.c.b16 %v525, %v519
    %v862 = vpack.c.b16 %v526, %v520
    %v863 = vpack.c.b16 %v527, %v521
    %v864 = vpack.c.b16 %v528, %v522
    %v865 = vpack.c.b16 %v529, %v523
    %v866 = vpack.c.b16 %v530, %v524
    %v867 = vpack.c.b16 %v537, %v531
    %v868 = vpack.c.b16 %v538, %v532
    %v869 = vpack.c.b16 %v539, %v533
    %v870 = vpack.c.b16 %v540, %v534
    %v871 = vpack.c.b16 %v541, %v535
    %v872 = vpack.c.b16 %v542, %v536
    %v873 = vpack.c.b16 %v549, %v543
    %v874 = vpack.c.b16 %v550, %v544
    %v875 = vpack.c.b16 %v551, %v545
    %v876 = vpack.c.b16 %v552, %v546
    %v877 = vpack.c.b16 %v553, %v547
    %v878 = vpack.c.b16 %v554, %v548
    %v879 = vpack.c.b16 %v561, %v555
    %v880 = vpack.c.b16 %v562, %v556
    %v881 = vpack.c.b16 %v563, %v557
    %v882 = vpack.c.b16 %v564, %v558
    %v883 = vpack.c.b16 %v565, %v559
    %v884 = vpack.c.b16 %v566, %v560
    %v885 = vpack.c.b16 %v573, %v567
    %v886 = vpack.c.b16 %v574, %v568
    %v887 = vpack.c.b16 %v575, %v569
    %v888 = vpack.c.b16 %v576, %v570
    %v889 = vpack.c.b16 %v577, %v571
    %v890 = vpack.c.b16 %v578, %v572
    %v891 = vpack.c.b16 %v585, %v579
    %v892 = vpack.c.b16 %v586, %v580
    %v893 = vpack.c.b16 %v587, %v581
    %v894 = vpack.c.b16 %v588, %v582
    %v895 = vpack.c.b16 %v589, %v583
    %v896 = vpack.c.b16 %v590, %v584
    %v897 = vpack.c.b16 %v597, %v591
    %v898 = vpack.c.b16 %v598, %v592
    %v899 = vpack.c.b16 %v599, %v593
    %v900 = vpack.c.b16 %v600, %v594
    %v901 = vpack.c.b16 %v601, %v595
    %v902 = vpack.c.b16 %v602, %v596
    %v903 = vpack.c.b16 %v609, %v603
    %v904 = vpack.c.b16 %v610, %v604
    %v905 = vpack.c.b16 %v611, %v605
    %v906 = vpack.c.b16 %v612, %v606
    %v907 = vpack.c.b16 %v613, %v607
    %v908 = vpack.c.b16 %v614, %v608
    %v909 = vpack.c.b16 %v621, %v615
    %v910 = vpack.c.b16 %v622, %v616
    %v911 = vpack.c.b16 %v623, %v617
    %v912 = vpack.c.b16 %v624, %v618
    %v913 = vpack.c.b16 %v625, %v619
    %v914 = vpack.c.b16 %v626, %v620
    %v915 = vpack.c.b16 %v633, %v627
    %v916 = vpack.c.b16 %v634, %v628
    %v917 = vpack.c.b16 %v635, %v629
    %v918 = vpack.c.b16 %v636, %v630
    %v919 = vpack.c.b16 %v637, %v631
    %v920 = vpack.c.b16 %v638, %v632
    %v921 = vpack.c.b16 %v645, %v639
    %v922 = vpack.c.b16 %v646, %v640
    %v923 = vpack.c.b16 %v647, %v641
    %v924 = vpack.c.b16 %v648, %v642
    %v925 = vpack.c.b16 %v649, %v643
    %v926 = vpack.c.b16 %v650, %v644
    %v927 = vpack.c.b16 %v657, %v651
    %v928 = vpack.c.b16 %v658, %v652
    %v929 = vpack.c.b16 %v659, %v653
    %v930 = vpack.c.b16 %v660, %v654
    %v931 = vpack.c.b16 %v661, %v655
    %v932 = vpack.c.b16 %v662, %v656
    %v933 = vpack.c.b16 %v669, %v663
    %v934 = vpack.c.b16 %v670, %v664
    %v935 = vpack.c.b16 %v671, %v665
    %v936 = vpack.c.b16 %v672, %v666
    %v937 = vpack.c.b16 %v673, %v667
    %v938 = vpack.c.b16 %v674, %v668
    %v939 = vpack.c.b16 %v681, %v675
    %v940 = vpack.c.b16 %v682, %v676
    %v941 = vpack.c.b16 %v683, %v677
    %v942 = vpack.c.b16 %v684, %v678
    %v943 = vpack.c.b16 %v685, %v679
    %v944 = vpack.c.b16 %v686, %v680
    %v945 = vpack.c.b16 %v693, %v687
    %v946 = vpack.c.b16 %v694, %v688
    %v947 = vpack.c.b16 %v695, %v689
    %v948 = vpack.c.b16 %v696, %v690
    %v949 = vpack.c.b16 %v697, %v691
    %v950 = vpack.c.b16 %v698, %v692
    %v951 = vpack.c.b16 %v705, %v699
    %v952 = vpack.c.b16 %v706, %v700
    %v953 = vpack.c.b16 %v707, %v701
    %v954 = vpack.c.b16 %v708, %v702
    %v955 = vpack.c.b16 %v709, %v703
    %v956 = vpack.c.b16 %v710, %v704
    %v957 = vpack.c.b16 %v717, %v711
    %v958 = vpack.c.b16 %v718, %v712
    %v959 = vpack.c.b16 %v719, %v713
    %v960 = vpack.c.b16 %v720, %v714
    %v961 = vpack.c.b16 %v721, %v715
    %v962 = vpack.c.b16 %v722, %v716
    %v963 = vpack.c.b16 %v729, %v723
    %v964 = vpack.c.b16 %v730, %v724
    %v965 = vpack.c.b16 %v731, %v725
    %v966 = vpack.c.b16 %v732, %v726
    %v967 = vpack.c.b16 %v733, %v727
    %v968 = vpack.c.b16 %v734, %v728
    %v969 = vpack.c.b16 %v741, %v735
    %v970 = vpack.c.b16 %v742, %v736
    %v971 = vpack.c.b16 %v743, %v737
    %v972 = vpack.c.b16 %v744, %v738
    %v973 = vpack.c.b16 %v745, %v739
    %v974 = vpack.c.b16 %v746, %v740
    %v975 = vpack.c.b16 %v753, %v747
    %v976 = vpack.c.b16 %v754, %v748
    %v977 = vpack.c.b16 %v755, %v749
    %v978 = vpack.c.b16 %v756, %v750
    %v979 = vpack.c.b16 %v757, %v751
    %v980 = vpack.c.b16 %v758, %v752
    %v981 = vpack.c.b16 %v765, %v759
    %v982 = vpack.c.b16 %v766, %v760
    %v983 = vpack.c.b16 %v767, %v761
    %v984 = vpack.c.b16 %v768, %v762
    %v985 = vpack.c.b16 %v769, %v763
    %v986 = vpack.c.b16 %v770, %v764
    %v987 = vpack.c.b16 %v777, %v771
    %v988 = vpack.c.b16 %v778, %v772
    %v989 = vpack.c.b16 %v779, %v773
    %v990 = vpack.c.b16 %v780, %v774
    %v991 = vpack.c.b16 %v781, %v775
    %v992 = vpack.c.b16 %v782, %v776
    %v993 = vpack.c.b16 %v789, %v783
    %v994 = vpack.c.b16 %v790, %v784
    %v995 = vpack.c.b16 %v791, %v785
    %v996 = vpack.c.b16 %v792, %v786
    %v997 = vpack.c.b16 %v793, %v787
    %v998 = vpack.c.b16 %v794, %v788
    %v999 = vpack.c.b16 %v801, %v795
    %v1000 = vpack.c.b16 %v802, %v796
    %v1001 = vpack.c.b16 %v803, %v797
    %v1002 = vpack.c.b16 %v804, %v798
    %v1003 = vpack.c.b16 %v805, %v799
    %v1004 = vpack.c.b16 %v806, %v800
    %v1005 = vpack.c.b16 %v813, %v807
    %v1006 = vpack.c.b16 %v814, %v808
    %v1007 = vpack.c.b16 %v815, %v809
    %v1008 = vpack.c.b16 %v816, %v810
    %v1009 = vpack.c.b16 %v817, %v811
    %v1010 = vpack.c.b16 %v818, %v812
    %1203 = vmatpush.bf16.msra.mxu0 %v861
    %1204 = vmatpush.bf16.msra.mxu0 %v855
    %1205 = vmatpush.bf16.msra.mxu0 %v849
    %1206 = vmatpush.bf16.msra.mxu0 %v843
    %1207 = vmatpush.bf16.msra.mxu0 %v837
    %1208 = vmatpush.bf16.msra.mxu0 %v831
    %1209 = vmatpush.bf16.msra.mxu0 %v825
    %1210 = vmatpush.bf16.msra.mxu0 %v819
    %1211 = vmatmul.bf16.gmra.mxu0 %v47
    %v1212 = vpop.f32.mrf.mxu0
    %v1213 = vadd.f32 0.0, %v1212
    %v1214 = vpop.f32.mrf.mxu0
    %1215 = vdwg.mxu0
    %1216 = vmatpush.bf16.msra.mxu0 %v909
    %1217 = vmatpush.bf16.msra.mxu0 %v903
    %1218 = vmatpush.bf16.msra.mxu0 %v897
    %1219 = vmatpush.bf16.msra.mxu0 %v891
    %1220 = vmatpush.bf16.msra.mxu0 %v885
    %1221 = vmatpush.bf16.msra.mxu0 %v879
    %1222 = vmatpush.bf16.msra.mxu0 %v873
    %1223 = vmatpush.bf16.msra.mxu0 %v867
    %1224 = vmatmul.bf16.gmra.mxu0 %v48
    %v1225 = vpop.f32.mrf.mxu0
    %v1226 = vadd.f32 %v1213, %v1225
    %v1227 = vpop.f32.mrf.mxu0
    %1228 = vdwg.mxu0
    %1229 = vmatpush.bf16.msra.mxu0 %v957
    %1230 = vmatpush.bf16.msra.mxu0 %v951
    %1231 = vmatpush.bf16.msra.mxu0 %v945
    %1232 = vmatpush.bf16.msra.mxu0 %v939
    %1233 = vmatpush.bf16.msra.mxu0 %v933
    %1234 = vmatpush.bf16.msra.mxu0 %v927
    %1235 = vmatpush.bf16.msra.mxu0 %v921
    %1236 = vmatpush.bf16.msra.mxu0 %v915
    %1237 = vmatmul.bf16.gmra.mxu0 %v49
    %v1238 = vpop.f32.mrf.mxu0
    %v1239 = vadd.f32 %v1226, %v1238
    %v1240 = vpop.f32.mrf.mxu0
    %1241 = vdwg.mxu0
    %1242 = vmatpush.bf16.msra.mxu0 %v1005
    %1243 = vmatpush.bf16.msra.mxu0 %v999
    %1244 = vmatpush.bf16.msra.mxu0 %v993
    %1245 = vmatpush.bf16.msra.mxu0 %v987
    %1246 = vmatpush.bf16.msra.mxu0 %v981
    %1247 = vmatpush.bf16.msra.mxu0 %v975
    %1248 = vmatpush.bf16.msra.mxu0 %v969
    %1249 = vmatpush.bf16.msra.mxu0 %v963
    %1250 = vmatmul.bf16.gmra.mxu0 %v50
    %v1251 = vpop.f32.mrf.mxu0
    %v1252 = vadd.f32 %v1239, %v1251
    %v1253 = vpop.f32.mrf.mxu0
    %1254 = vdwg.mxu0
    %1255 = vmatpush.bf16.msra.mxu0 %v862
    %1256 = vmatpush.bf16.msra.mxu0 %v856
    %1257 = vmatpush.bf16.msra.mxu0 %v850
    %1258 = vmatpush.bf16.msra.mxu0 %v844
    %1259 = vmatpush.bf16.msra.mxu0 %v838
    %1260 = vmatpush.bf16.msra.mxu0 %v832
    %1261 = vmatpush.bf16.msra.mxu0 %v826
    %1262 = vmatpush.bf16.msra.mxu0 %v820
    %1263 = vmatmul.bf16.gmra.mxu0 %v47
    %v1264 = vpop.f32.mrf.mxu0
    %v1265 = vadd.f32 0.0, %v1264
    %v1266 = vpop.f32.mrf.mxu0
    %1267 = vdwg.mxu0
    %1268 = vmatpush.bf16.msra.mxu0 %v910
    %1269 = vmatpush.bf16.msra.mxu0 %v904
    %1270 = vmatpush.bf16.msra.mxu0 %v898
    %1271 = vmatpush.bf16.msra.mxu0 %v892
    %1272 = vmatpush.bf16.msra.mxu0 %v886
    %1273 = vmatpush.bf16.msra.mxu0 %v880
    %1274 = vmatpush.bf16.msra.mxu0 %v874
    %1275 = vmatpush.bf16.msra.mxu0 %v868
    %1276 = vmatmul.bf16.gmra.mxu0 %v48
    %v1277 = vpop.f32.mrf.mxu0
    %v1278 = vadd.f32 %v1265, %v1277
    %v1279 = vpop.f32.mrf.mxu0
    %1280 = vdwg.mxu0
    %1281 = vmatpush.bf16.msra.mxu0 %v958
    %1282 = vmatpush.bf16.msra.mxu0 %v952
    %1283 = vmatpush.bf16.msra.mxu0 %v946
    %1284 = vmatpush.bf16.msra.mxu0 %v940
    %1285 = vmatpush.bf16.msra.mxu0 %v934
    %1286 = vmatpush.bf16.msra.mxu0 %v928
    %1287 = vmatpush.bf16.msra.mxu0 %v922
    %1288 = vmatpush.bf16.msra.mxu0 %v916
    %1289 = vmatmul.bf16.gmra.mxu0 %v49
    %v1290 = vpop.f32.mrf.mxu0
    %v1291 = vadd.f32 %v1278, %v1290
    %v1292 = vpop.f32.mrf.mxu0
    %1293 = vdwg.mxu0
    %1294 = vmatpush.bf16.msra.mxu0 %v1006
    %1295 = vmatpush.bf16.msra.mxu0 %v1000
    %1296 = vmatpush.bf16.msra.mxu0 %v994
    %1297 = vmatpush.bf16.msra.mxu0 %v988
    %1298 = vmatpush.bf16.msra.mxu0 %v982
    %1299 = vmatpush.bf16.msra.mxu0 %v976
    %1300 = vmatpush.bf16.msra.mxu0 %v970
    %1301 = vmatpush.bf16.msra.mxu0 %v964
    %1302 = vmatmul.bf16.gmra.mxu0 %v50
    %v1303 = vpop.f32.mrf.mxu0
    %v1304 = vadd.f32 %v1291, %v1303
    %v1305 = vpop.f32.mrf.mxu0
    %1306 = vdwg.mxu0
    %1307 = vmatpush.bf16.msra.mxu0 %v863
    %1308 = vmatpush.bf16.msra.mxu0 %v857
    %1309 = vmatpush.bf16.msra.mxu0 %v851
    %1310 = vmatpush.bf16.msra.mxu0 %v845
    %1311 = vmatpush.bf16.msra.mxu0 %v839
    %1312 = vmatpush.bf16.msra.mxu0 %v833
    %1313 = vmatpush.bf16.msra.mxu0 %v827
    %1314 = vmatpush.bf16.msra.mxu0 %v821
    %1315 = vmatmul.bf16.gmra.mxu0 %v47
    %v1316 = vpop.f32.mrf.mxu0
    %v1317 = vadd.f32 0.0, %v1316
    %v1318 = vpop.f32.mrf.mxu0
    %1319 = vdwg.mxu0
    %1320 = vmatpush.bf16.msra.mxu0 %v911
    %1321 = vmatpush.bf16.msra.mxu0 %v905
    %1322 = vmatpush.bf16.msra.mxu0 %v899
    %1323 = vmatpush.bf16.msra.mxu0 %v893
    %1324 = vmatpush.bf16.msra.mxu0 %v887
    %1325 = vmatpush.bf16.msra.mxu0 %v881
    %1326 = vmatpush.bf16.msra.mxu0 %v875
    %1327 = vmatpush.bf16.msra.mxu0 %v869
    %1328 = vmatmul.bf16.gmra.mxu0 %v48
    %v1329 = vpop.f32.mrf.mxu0
    %v1330 = vadd.f32 %v1317, %v1329
    %v1331 = vpop.f32.mrf.mxu0
    %1332 = vdwg.mxu0
    %1333 = vmatpush.bf16.msra.mxu0 %v959
    %1334 = vmatpush.bf16.msra.mxu0 %v953
    %1335 = vmatpush.bf16.msra.mxu0 %v947
    %1336 = vmatpush.bf16.msra.mxu0 %v941
    %1337 = vmatpush.bf16.msra.mxu0 %v935
    %1338 = vmatpush.bf16.msra.mxu0 %v929
    %1339 = vmatpush.bf16.msra.mxu0 %v923
    %1340 = vmatpush.bf16.msra.mxu0 %v917
    %1341 = vmatmul.bf16.gmra.mxu0 %v49
    %v1342 = vpop.f32.mrf.mxu0
    %v1343 = vadd.f32 %v1330, %v1342
    %v1344 = vpop.f32.mrf.mxu0
    %1345 = vdwg.mxu0
    %1346 = vmatpush.bf16.msra.mxu0 %v1007
    %1347 = vmatpush.bf16.msra.mxu0 %v1001
    %1348 = vmatpush.bf16.msra.mxu0 %v995
    %1349 = vmatpush.bf16.msra.mxu0 %v989
    %1350 = vmatpush.bf16.msra.mxu0 %v983
    %1351 = vmatpush.bf16.msra.mxu0 %v977
    %1352 = vmatpush.bf16.msra.mxu0 %v971
    %1353 = vmatpush.bf16.msra.mxu0 %v965
    %1354 = vmatmul.bf16.gmra.mxu0 %v50
    %v1355 = vpop.f32.mrf.mxu0
    %v1356 = vadd.f32 %v1343, %v1355
    %v1357 = vpop.f32.mrf.mxu0
    %1358 = vdwg.mxu0
    %1359 = vmatpush.bf16.msra.mxu0 %v864
    %1360 = vmatpush.bf16.msra.mxu0 %v858
    %1361 = vmatpush.bf16.msra.mxu0 %v852
    %1362 = vmatpush.bf16.msra.mxu0 %v846
    %1363 = vmatpush.bf16.msra.mxu0 %v840
    %1364 = vmatpush.bf16.msra.mxu0 %v834
    %1365 = vmatpush.bf16.msra.mxu0 %v828
    %1366 = vmatpush.bf16.msra.mxu0 %v822
    %1367 = vmatmul.bf16.gmra.mxu0 %v47
    %v1368 = vpop.f32.mrf.mxu0
    %v1369 = vadd.f32 0.0, %v1368
    %v1370 = vpop.f32.mrf.mxu0
    %1371 = vdwg.mxu0
    %1372 = vmatpush.bf16.msra.mxu0 %v912
    %1373 = vmatpush.bf16.msra.mxu0 %v906
    %1374 = vmatpush.bf16.msra.mxu0 %v900
    %1375 = vmatpush.bf16.msra.mxu0 %v894
    %1376 = vmatpush.bf16.msra.mxu0 %v888
    %1377 = vmatpush.bf16.msra.mxu0 %v882
    %1378 = vmatpush.bf16.msra.mxu0 %v876
    %1379 = vmatpush.bf16.msra.mxu0 %v870
    %1380 = vmatmul.bf16.gmra.mxu0 %v48
    %v1381 = vpop.f32.mrf.mxu0
    %v1382 = vadd.f32 %v1369, %v1381
    %v1383 = vpop.f32.mrf.mxu0
    %1384 = vdwg.mxu0
    %1385 = vmatpush.bf16.msra.mxu0 %v960
    %1386 = vmatpush.bf16.msra.mxu0 %v954
    %1387 = vmatpush.bf16.msra.mxu0 %v948
    %1388 = vmatpush.bf16.msra.mxu0 %v942
    %1389 = vmatpush.bf16.msra.mxu0 %v936
    %1390 = vmatpush.bf16.msra.mxu0 %v930
    %1391 = vmatpush.bf16.msra.mxu0 %v924
    %1392 = vmatpush.bf16.msra.mxu0 %v918
    %1393 = vmatmul.bf16.gmra.mxu0 %v49
    %v1394 = vpop.f32.mrf.mxu0
    %v1395 = vadd.f32 %v1382, %v1394
    %v1396 = vpop.f32.mrf.mxu0
    %1397 = vdwg.mxu0
    %1398 = vmatpush.bf16.msra.mxu0 %v1008
    %1399 = vmatpush.bf16.msra.mxu0 %v1002
    %1400 = vmatpush.bf16.msra.mxu0 %v996
    %1401 = vmatpush.bf16.msra.mxu0 %v990
    %1402 = vmatpush.bf16.msra.mxu0 %v984
    %1403 = vmatpush.bf16.msra.mxu0 %v978
    %1404 = vmatpush.bf16.msra.mxu0 %v972
    %1405 = vmatpush.bf16.msra.mxu0 %v966
    %1406 = vmatmul.bf16.gmra.mxu0 %v50
    %v1407 = vpop.f32.mrf.mxu0
    %v1408 = vadd.f32 %v1395, %v1407
    %v1409 = vpop.f32.mrf.mxu0
    %1410 = vdwg.mxu0
    %1411 = vmatpush.bf16.msra.mxu0 %v865
    %1412 = vmatpush.bf16.msra.mxu0 %v859
    %1413 = vmatpush.bf16.msra.mxu0 %v853
    %1414 = vmatpush.bf16.msra.mxu0 %v847
    %1415 = vmatpush.bf16.msra.mxu0 %v841
    %1416 = vmatpush.bf16.msra.mxu0 %v835
    %1417 = vmatpush.bf16.msra.mxu0 %v829
    %1418 = vmatpush.bf16.msra.mxu0 %v823
    %1419 = vmatmul.bf16.gmra.mxu0 %v47
    %v1420 = vpop.f32.mrf.mxu0
    %v1421 = vadd.f32 0.0, %v1420
    %v1422 = vpop.f32.mrf.mxu0
    %1423 = vdwg.mxu0
    %1424 = vmatpush.bf16.msra.mxu0 %v913
    %1425 = vmatpush.bf16.msra.mxu0 %v907
    %1426 = vmatpush.bf16.msra.mxu0 %v901
    %1427 = vmatpush.bf16.msra.mxu0 %v895
    %1428 = vmatpush.bf16.msra.mxu0 %v889
    %1429 = vmatpush.bf16.msra.mxu0 %v883
    %1430 = vmatpush.bf16.msra.mxu0 %v877
    %1431 = vmatpush.bf16.msra.mxu0 %v871
    %1432 = vmatmul.bf16.gmra.mxu0 %v48
    %v1433 = vpop.f32.mrf.mxu0
    %v1434 = vadd.f32 %v1421, %v1433
    %v1435 = vpop.f32.mrf.mxu0
    %1436 = vdwg.mxu0
    %1437 = vmatpush.bf16.msra.mxu0 %v961
    %1438 = vmatpush.bf16.msra.mxu0 %v955
    %1439 = vmatpush.bf16.msra.mxu0 %v949
    %1440 = vmatpush.bf16.msra.mxu0 %v943
    %1441 = vmatpush.bf16.msra.mxu0 %v937
    %1442 = vmatpush.bf16.msra.mxu0 %v931
    %1443 = vmatpush.bf16.msra.mxu0 %v925
    %1444 = vmatpush.bf16.msra.mxu0 %v919
    %1445 = vmatmul.bf16.gmra.mxu0 %v49
    %v1446 = vpop.f32.mrf.mxu0
    %v1447 = vadd.f32 %v1434, %v1446
    %v1448 = vpop.f32.mrf.mxu0
    %1449 = vdwg.mxu0
    %1450 = vmatpush.bf16.msra.mxu0 %v1009
    %1451 = vmatpush.bf16.msra.mxu0 %v1003
    %1452 = vmatpush.bf16.msra.mxu0 %v997
    %1453 = vmatpush.bf16.msra.mxu0 %v991
    %1454 = vmatpush.bf16.msra.mxu0 %v985
    %1455 = vmatpush.bf16.msra.mxu0 %v979
    %1456 = vmatpush.bf16.msra.mxu0 %v973
    %1457 = vmatpush.bf16.msra.mxu0 %v967
    %1458 = vmatmul.bf16.gmra.mxu0 %v50
    %v1459 = vpop.f32.mrf.mxu0
    %v1460 = vadd.f32 %v1447, %v1459
    %v1461 = vpop.f32.mrf.mxu0
    %1462 = vdwg.mxu0
    %1463 = vmatpush.bf16.msra.mxu0 %v866
    %1464 = vmatpush.bf16.msra.mxu0 %v860
    %1465 = vmatpush.bf16.msra.mxu0 %v854
    %1466 = vmatpush.bf16.msra.mxu0 %v848
    %1467 = vmatpush.bf16.msra.mxu0 %v842
    %1468 = vmatpush.bf16.msra.mxu0 %v836
    %1469 = vmatpush.bf16.msra.mxu0 %v830
    %1470 = vmatpush.bf16.msra.mxu0 %v824
    %1471 = vmatmul.bf16.gmra.mxu0 %v47
    %v1472 = vpop.f32.mrf.mxu0
    %v1473 = vadd.f32 0.0, %v1472
    %v1474 = vpop.f32.mrf.mxu0
    %1475 = vdwg.mxu0
    %1476 = vmatpush.bf16.msra.mxu0 %v914
    %1477 = vmatpush.bf16.msra.mxu0 %v908
    %1478 = vmatpush.bf16.msra.mxu0 %v902
    %1479 = vmatpush.bf16.msra.mxu0 %v896
    %1480 = vmatpush.bf16.msra.mxu0 %v890
    %1481 = vmatpush.bf16.msra.mxu0 %v884
    %1482 = vmatpush.bf16.msra.mxu0 %v878
    %1483 = vmatpush.bf16.msra.mxu0 %v872
    %1484 = vmatmul.bf16.gmra.mxu0 %v48
    %v1485 = vpop.f32.mrf.mxu0
    %v1486 = vadd.f32 %v1473, %v1485
    %v1487 = vpop.f32.mrf.mxu0
    %1488 = vdwg.mxu0
    %1489 = vmatpush.bf16.msra.mxu0 %v962
    %1490 = vmatpush.bf16.msra.mxu0 %v956
    %1491 = vmatpush.bf16.msra.mxu0 %v950
    %1492 = vmatpush.bf16.msra.mxu0 %v944
    %1493 = vmatpush.bf16.msra.mxu0 %v938
    %1494 = vmatpush.bf16.msra.mxu0 %v932
    %1495 = vmatpush.bf16.msra.mxu0 %v926
    %1496 = vmatpush.bf16.msra.mxu0 %v920
    %1497 = vmatmul.bf16.gmra.mxu0 %v49
    %v1498 = vpop.f32.mrf.mxu0
    %v1499 = vadd.f32 %v1486, %v1498
    %v1500 = vpop.f32.mrf.mxu0
    %1501 = vdwg.mxu0
    %1502 = vmatpush.bf16.msra.mxu0 %v1010
    %1503 = vmatpush.bf16.msra.mxu0 %v1004
    %1504 = vmatpush.bf16.msra.mxu0 %v998
    %1505 = vmatpush.bf16.msra.mxu0 %v992
    %1506 = vmatpush.bf16.msra.mxu0 %v986
    %1507 = vmatpush.bf16.msra.mxu0 %v980
    %1508 = vmatpush.bf16.msra.mxu0 %v974
    %1509 = vmatpush.bf16.msra.mxu0 %v968
    %1510 = vmatmul.bf16.gmra.mxu0 %v50
    %v1511 = vpop.f32.mrf.mxu0
    %v1512 = vadd.f32 %v1499, %v1511
    %v1513 = vpop.f32.mrf.mxu0
    %1514 = vdwg.mxu0
    %v1515 = vld [vmem:[%s3] sm:$0x3f]
    %v1517 = vperm.slane %v1515, 0
    %v1518 = vperm.slane %v1515, 1
    %v1519 = vperm.slane %v1515, 2
    %v1520 = vperm.slane %v1515, 3
    %v1521 = vperm.slane %v1515, 4
    %v1522 = vperm.slane %v1515, 5
    %v1529 = vmul.f32 %v1252, %v1517
    %v1530 = vmul.f32 %v1304, %v1518
    %v1531 = vmul.f32 %v1356, %v1519
    %v1532 = vmul.f32 %v1408, %v1520
    %v1533 = vmul.f32 %v1460, %v1521
    %v1534 = vmul.f32 %v1512, %v1522
    %v1535 = vld [vmem:[%s4] sm:$0x3f]
    %v1537 = vperm.slane %v1535, 0
    %v1538 = vperm.slane %v1535, 1
    %v1539 = vperm.slane %v1535, 2
    %v1540 = vperm.slane %v1535, 3
    %v1541 = vperm.slane %v1535, 4
    %v1542 = vperm.slane %v1535, 5
    %v1549 = vadd.f32 %v1529, %v1537
    %v1550 = vadd.f32 %v1530, %v1538
    %v1551 = vadd.f32 %v1531, %v1539
    %v1552 = vadd.f32 %v1532, %v1540
    %v1553 = vadd.f32 %v1533, %v1541
    %v1554 = vadd.f32 %v1534, %v1542
    %v1555 = vmax.f32 %v1549, 0.0
    %v1556 = vmax.f32 %v1550, 0.0
    %v1557 = vmax.f32 %v1551, 0.0
    %v1558 = vmax.f32 %v1552, 0.0
    %v1559 = vmax.f32 %v1553, 0.0
    %v1560 = vmax.f32 %v1554, 0.0
    %v1561 = vpack.c.bf16 %v1555, %v1555
    %v1562 = vpack.c.bf16 %v1556, %v1556
    %v1563 = vpack.c.bf16 %v1557, %v1557
    %v1564 = vpack.c.bf16 %v1558, %v1558
    %v1565 = vpack.c.bf16 %v1559, %v1559
    %v1566 = vpack.c.bf16 %v1560, %v1560
    %v1567 = vld [vmem:[%s5] sm:$0xf]
    %v1568 = vld [vmem:[%s5 + $0x4] sm:$0xf]
    %v1569 = vld [vmem:[%s5 + $0x8] sm:$0xf]
    %v1570 = vld [vmem:[%s5 + $0xc] sm:$0xf]
    %v1571 = vld [vmem:[%s5 + $0x10] sm:$0xf]
    %v1572 = vld [vmem:[%s5 + $0x14] sm:$0xf]
    %v1573 = vld [vmem:[%s5 + $0x18] sm:$0xf]
    %v1574 = vld [vmem:[%s5 + $0x1c] sm:$0xf]
    %v1575 = vld [vmem:[%s5 + $0x20] sm:$0xf]
    %v1576 = vld [vmem:[%s5 + $0x24] sm:$0xf]
    %v1577 = vld [vmem:[%s5 + $0x28] sm:$0xf]
    %v1578 = vld [vmem:[%s5 + $0x2c] sm:$0xf]
    %v1579 = vld [vmem:[%s5 + $0x30] sm:$0xf]
    %v1580 = vld [vmem:[%s5 + $0x34] sm:$0xf]
    %v1581 = vld [vmem:[%s5 + $0x38] sm:$0xf]
    %v1582 = vld [vmem:[%s5 + $0x3c] sm:$0xf]
    %v1583 = vld [vmem:[%s5 + $0x40] sm:$0xf]
    %v1584 = vld [vmem:[%s5 + $0x44] sm:$0xf]
    %v1585 = vld [vmem:[%s5 + $0x48] sm:$0xf]
    %v1586 = vld [vmem:[%s5 + $0x4c] sm:$0xf]
    %v1587 = vld [vmem:[%s5 + $0x50] sm:$0xf]
    %v1588 = vld [vmem:[%s5 + $0x54] sm:$0xf]
    %v1589 = vld [vmem:[%s5 + $0x58] sm:$0xf]
    %v1590 = vld [vmem:[%s5 + $0x5c] sm:$0xf]
    %v1591 = vld [vmem:[%s5 + $0x60] sm:$0xf]
    %v1592 = vld [vmem:[%s5 + $0x64] sm:$0xf]
    %v1593 = vld [vmem:[%s5 + $0x68] sm:$0xf]
    %v1594 = vld [vmem:[%s5 + $0x6c] sm:$0xf]
    %v1595 = vld [vmem:[%s5 + $0x70] sm:$0xf]
    %v1596 = vld [vmem:[%s5 + $0x74] sm:$0xf]
    %v1597 = vld [vmem:[%s5 + $0x78] sm:$0xf]
    %v1598 = vld [vmem:[%s5 + $0x7c] sm:$0xf]
    %v1599 = vld [vmem:[%s5 + $0x80] sm:$0xf]
    %v1600 = vld [vmem:[%s5 + $0x84] sm:$0xf]
    %v1601 = vld [vmem:[%s5 + $0x88] sm:$0xf]
    %v1602 = vld [vmem:[%s5 + $0x8c] sm:$0xf]
    %v1603 = vld [vmem:[%s5 + $0x90] sm:$0xf]
    %v1604 = vld [vmem:[%s5 + $0x94] sm:$0xf]
    %v1605 = vld [vmem:[%s5 + $0x98] sm:$0xf]
    %v1606 = vld [vmem:[%s5 + $0x9c] sm:$0xf]
    %v1607 = vld [vmem:[%s5 + $0xa0] sm:$0xf]
    %v1608 = vld [vmem:[%s5 + $0xa4] sm:$0xf]
    %v1609 = vld [vmem:[%s5 + $0xa8] sm:$0xf]
    %v1610 = vld [vmem:[%s5 + $0xac] sm:$0xf]
    %v1611 = vld [vmem:[%s5 + $0xb0] sm:$0xf]
    %v1612 = vld [vmem:[%s5 + $0xb4] sm:$0xf]
    %v1613 = vld [vmem:[%s5 + $0xb8] sm:$0xf]
    %v1614 = vld [vmem:[%s5 + $0xbc] sm:$0xf]
    %v1615 = vld [vmem:[%s5 + $0xc0] sm:$0xf]
    %v1616 = vld [vmem:[%s5 + $0xc4] sm:$0xf]
    %v1617 = vld [vmem:[%s5 + $0xc8] sm:$0xf]
    %v1618 = vld [vmem:[%s5 + $0xcc] sm:$0xf]
    %v1619 = vld [vmem:[%s5 + $0xd0] sm:$0xf]
    %v1620 = vld [vmem:[%s5 + $0xd4] sm:$0xf]
    %v1621 = vld [vmem:[%s5 + $0xd8] sm:$0xf]
    %v1622 = vld [vmem:[%s5 + $0xdc] sm:$0xf]
    %v1623 = vld [vmem:[%s5 + $0xe0] sm:$0xf]
    %v1624 = vld [vmem:[%s5 + $0xe4] sm:$0xf]
    %v1625 = vld [vmem:[%s5 + $0xe8] sm:$0xf]
    %v1626 = vld [vmem:[%s5 + $0xec] sm:$0xf]
    %v1627 = vld [vmem:[%s5 + $0xf0] sm:$0xf]
    %v1628 = vld [vmem:[%s5 + $0xf4] sm:$0xf]
    %v1629 = vld [vmem:[%s5 + $0xf8] sm:$0xf]
    %v1630 = vld [vmem:[%s5 + $0xfc] sm:$0xf]
    %v1631 = vld [vmem:[%s5 + $0x100] sm:$0xf]
    %v1632 = vld [vmem:[%s5 + $0x104] sm:$0xf]
    %v1633 = vld [vmem:[%s5 + $0x108] sm:$0xf]
    %v1634 = vld [vmem:[%s5 + $0x10c] sm:$0xf]
    %v1635 = vld [vmem:[%s5 + $0x110] sm:$0xf]
    %v1636 = vld [vmem:[%s5 + $0x114] sm:$0xf]
    %v1637 = vld [vmem:[%s5 + $0x118] sm:$0xf]
    %v1638 = vld [vmem:[%s5 + $0x11c] sm:$0xf]
    %v1639 = vld [vmem:[%s5 + $0x120] sm:$0xf]
    %v1640 = vld [vmem:[%s5 + $0x124] sm:$0xf]
    %v1641 = vld [vmem:[%s5 + $0x128] sm:$0xf]
    %v1642 = vld [vmem:[%s5 + $0x12c] sm:$0xf]
    %v1643 = vld [vmem:[%s5 + $0x130] sm:$0xf]
    %v1644 = vld [vmem:[%s5 + $0x134] sm:$0xf]
    %v1645 = vld [vmem:[%s5 + $0x138] sm:$0xf]
    %v1646 = vld [vmem:[%s5 + $0x13c] sm:$0xf]
    %v1647 = vld [vmem:[%s5 + $0x140] sm:$0xf]
    %v1648 = vld [vmem:[%s5 + $0x144] sm:$0xf]
    %v1649 = vld [vmem:[%s5 + $0x148] sm:$0xf]
    %v1650 = vld [vmem:[%s5 + $0x14c] sm:$0xf]
    %v1651 = vld [vmem:[%s5 + $0x150] sm:$0xf]
    %v1652 = vld [vmem:[%s5 + $0x154] sm:$0xf]
    %v1653 = vld [vmem:[%s5 + $0x158] sm:$0xf]
    %v1654 = vld [vmem:[%s5 + $0x15c] sm:$0xf]
    %v1655 = vld [vmem:[%s5 + $0x160] sm:$0xf]
    %v1656 = vld [vmem:[%s5 + $0x164] sm:$0xf]
    %v1657 = vld [vmem:[%s5 + $0x168] sm:$0xf]
    %v1658 = vld [vmem:[%s5 + $0x16c] sm:$0xf]
    %v1659 = vld [vmem:[%s5 + $0x170] sm:$0xf]
    %v1660 = vld [vmem:[%s5 + $0x174] sm:$0xf]
    %v1661 = vld [vmem:[%s5 + $0x178] sm:$0xf]
    %v1662 = vld [vmem:[%s5 + $0x17c] sm:$0xf]
    %v1663 = vld [vmem:[%s6] sm:$0x1]
    %v1665 = vperm.slane %v1663, 0
    %v1763 = vunpack.c.l.b16 %v1567
    %v1764 = vunpack.c.l.b16 %v1568
    %v1765 = vunpack.c.l.b16 %v1569
    %v1766 = vunpack.c.l.b16 %v1570
    %v1767 = vunpack.c.l.b16 %v1571
    %v1768 = vunpack.c.l.b16 %v1572
    %v1769 = vunpack.c.l.b16 %v1573
    %v1770 = vunpack.c.l.b16 %v1574
    %v1771 = vunpack.c.l.b16 %v1575
    %v1772 = vunpack.c.l.b16 %v1576
    %v1773 = vunpack.c.l.b16 %v1577
    %v1774 = vunpack.c.l.b16 %v1578
    %v1775 = vunpack.c.l.b16 %v1579
    %v1776 = vunpack.c.l.b16 %v1580
    %v1777 = vunpack.c.l.b16 %v1581
    %v1778 = vunpack.c.l.b16 %v1582
    %v1779 = vunpack.c.l.b16 %v1583
    %v1780 = vunpack.c.l.b16 %v1584
    %v1781 = vunpack.c.l.b16 %v1585
    %v1782 = vunpack.c.l.b16 %v1586
    %v1783 = vunpack.c.l.b16 %v1587
    %v1784 = vunpack.c.l.b16 %v1588
    %v1785 = vunpack.c.l.b16 %v1589
    %v1786 = vunpack.c.l.b16 %v1590
    %v1787 = vunpack.c.l.b16 %v1591
    %v1788 = vunpack.c.l.b16 %v1592
    %v1789 = vunpack.c.l.b16 %v1593
    %v1790 = vunpack.c.l.b16 %v1594
    %v1791 = vunpack.c.l.b16 %v1595
    %v1792 = vunpack.c.l.b16 %v1596
    %v1793 = vunpack.c.l.b16 %v1597
    %v1794 = vunpack.c.l.b16 %v1598
    %v1795 = vunpack.c.l.b16 %v1599
    %v1796 = vunpack.c.l.b16 %v1600
    %v1797 = vunpack.c.l.b16 %v1601
    %v1798 = vunpack.c.l.b16 %v1602
    %v1799 = vunpack.c.l.b16 %v1603
    %v1800 = vunpack.c.l.b16 %v1604
    %v1801 = vunpack.c.l.b16 %v1605
    %v1802 = vunpack.c.l.b16 %v1606
    %v1803 = vunpack.c.l.b16 %v1607
    %v1804 = vunpack.c.l.b16 %v1608
    %v1805 = vunpack.c.l.b16 %v1609
    %v1806 = vunpack.c.l.b16 %v1610
    %v1807 = vunpack.c.l.b16 %v1611
    %v1808 = vunpack.c.l.b16 %v1612
    %v1809 = vunpack.c.l.b16 %v1613
    %v1810 = vunpack.c.l.b16 %v1614
    %v1811 = vunpack.c.l.b16 %v1615
    %v1812 = vunpack.c.l.b16 %v1616
    %v1813 = vunpack.c.l.b16 %v1617
    %v1814 = vunpack.c.l.b16 %v1618
    %v1815 = vunpack.c.l.b16 %v1619
    %v1816 = vunpack.c.l.b16 %v1620
    %v1817 = vunpack.c.l.b16 %v1621
    %v1818 = vunpack.c.l.b16 %v1622
    %v1819 = vunpack.c.l.b16 %v1623
    %v1820 = vunpack.c.l.b16 %v1624
    %v1821 = vunpack.c.l.b16 %v1625
    %v1822 = vunpack.c.l.b16 %v1626
    %v1823 = vunpack.c.l.b16 %v1627
    %v1824 = vunpack.c.l.b16 %v1628
    %v1825 = vunpack.c.l.b16 %v1629
    %v1826 = vunpack.c.l.b16 %v1630
    %v1827 = vunpack.c.l.b16 %v1631
    %v1828 = vunpack.c.l.b16 %v1632
    %v1829 = vunpack.c.l.b16 %v1633
    %v1830 = vunpack.c.l.b16 %v1634
    %v1831 = vunpack.c.l.b16 %v1635
    %v1832 = vunpack.c.l.b16 %v1636
    %v1833 = vunpack.c.l.b16 %v1637
    %v1834 = vunpack.c.l.b16 %v1638
    %v1835 = vunpack.c.l.b16 %v1639
    %v1836 = vunpack.c.l.b16 %v1640
    %v1837 = vunpack.c.l.b16 %v1641
    %v1838 = vunpack.c.l.b16 %v1642
    %v1839 = vunpack.c.l.b16 %v1643
    %v1840 = vunpack.c.l.b16 %v1644
    %v1841 = vunpack.c.l.b16 %v1645
    %v1842 = vunpack.c.l.b16 %v1646
    %v1843 = vunpack.c.l.b16 %v1647
    %v1844 = vunpack.c.l.b16 %v1648
    %v1845 = vunpack.c.l.b16 %v1649
    %v1846 = vunpack.c.l.b16 %v1650
    %v1847 = vunpack.c.l.b16 %v1651
    %v1848 = vunpack.c.l.b16 %v1652
    %v1849 = vunpack.c.l.b16 %v1653
    %v1850 = vunpack.c.l.b16 %v1654
    %v1851 = vunpack.c.l.b16 %v1655
    %v1852 = vunpack.c.l.b16 %v1656
    %v1853 = vunpack.c.l.b16 %v1657
    %v1854 = vunpack.c.l.b16 %v1658
    %v1855 = vunpack.c.l.b16 %v1659
    %v1856 = vunpack.c.l.b16 %v1660
    %v1857 = vunpack.c.l.b16 %v1661
    %v1858 = vunpack.c.l.b16 %v1662
    %v1859 = vpack.c.b16 %v1764, %v1763
    %v1860 = vpack.c.b16 %v1766, %v1765
    %v1861 = vpack.c.b16 %v1768, %v1767
    %v1862 = vpack.c.b16 %v1770, %v1769
    %v1863 = vpack.c.b16 %v1772, %v1771
    %v1864 = vpack.c.b16 %v1774, %v1773
    %v1865 = vpack.c.b16 %v1776, %v1775
    %v1866 = vpack.c.b16 %v1778, %v1777
    %v1867 = vpack.c.b16 %v1780, %v1779
    %v1868 = vpack.c.b16 %v1782, %v1781
    %v1869 = vpack.c.b16 %v1784, %v1783
    %v1870 = vpack.c.b16 %v1786, %v1785
    %v1871 = vpack.c.b16 %v1788, %v1787
    %v1872 = vpack.c.b16 %v1790, %v1789
    %v1873 = vpack.c.b16 %v1792, %v1791
    %v1874 = vpack.c.b16 %v1794, %v1793
    %v1875 = vpack.c.b16 %v1796, %v1795
    %v1876 = vpack.c.b16 %v1798, %v1797
    %v1877 = vpack.c.b16 %v1800, %v1799
    %v1878 = vpack.c.b16 %v1802, %v1801
    %v1879 = vpack.c.b16 %v1804, %v1803
    %v1880 = vpack.c.b16 %v1806, %v1805
    %v1881 = vpack.c.b16 %v1808, %v1807
    %v1882 = vpack.c.b16 %v1810, %v1809
    %v1883 = vpack.c.b16 %v1812, %v1811
    %v1884 = vpack.c.b16 %v1814, %v1813
    %v1885 = vpack.c.b16 %v1816, %v1815
    %v1886 = vpack.c.b16 %v1818, %v1817
    %v1887 = vpack.c.b16 %v1820, %v1819
    %v1888 = vpack.c.b16 %v1822, %v1821
    %v1889 = vpack.c.b16 %v1824, %v1823
    %v1890 = vpack.c.b16 %v1826, %v1825
    %v1891 = vpack.c.b16 %v1828, %v1827
    %v1892 = vpack.c.b16 %v1830, %v1829
    %v1893 = vpack.c.b16 %v1832, %v1831
    %v1894 = vpack.c.b16 %v1834, %v1833
    %v1895 = vpack.c.b16 %v1836, %v1835
    %v1896 = vpack.c.b16 %v1838, %v1837
    %v1897 = vpack.c.b16 %v1840, %v1839
    %v1898 = vpack.c.b16 %v1842, %v1841
    %v1899 = vpack.c.b16 %v1844, %v1843
    %v1900 = vpack.c.b16 %v1846, %v1845
    %v1901 = vpack.c.b16 %v1848, %v1847
    %v1902 = vpack.c.b16 %v1850, %v1849
    %v1903 = vpack.c.b16 %v1852, %v1851
    %v1904 = vpack.c.b16 %v1854, %v1853
    %v1905 = vpack.c.b16 %v1856, %v1855
    %v1906 = vpack.c.b16 %v1858, %v1857
    %1955 = vmatpush.bf16.msra.mxu0 %v1866
    %1956 = vmatpush.bf16.msra.mxu0 %v1865
    %1957 = vmatpush.bf16.msra.mxu0 %v1864
    %1958 = vmatpush.bf16.msra.mxu0 %v1863
    %1959 = vmatpush.bf16.msra.mxu0 %v1862
    %1960 = vmatpush.bf16.msra.mxu0 %v1861
    %1961 = vmatpush.bf16.msra.mxu0 %v1860
    %1962 = vmatpush.bf16.msra.mxu0 %v1859
    %1963 = vmatmul.bf16.gmra.mxu0 %v1561
    %v1964 = vpop.f32.mrf.mxu0
    %v1965 = vadd.f32 %v1665, %v1964
    %v1966 = vpop.f32.mrf.mxu0
    %1967 = vdwg.mxu0
    %1968 = vmatpush.bf16.msra.mxu0 %v1874
    %1969 = vmatpush.bf16.msra.mxu0 %v1873
    %1970 = vmatpush.bf16.msra.mxu0 %v1872
    %1971 = vmatpush.bf16.msra.mxu0 %v1871
    %1972 = vmatpush.bf16.msra.mxu0 %v1870
    %1973 = vmatpush.bf16.msra.mxu0 %v1869
    %1974 = vmatpush.bf16.msra.mxu0 %v1868
    %1975 = vmatpush.bf16.msra.mxu0 %v1867
    %1976 = vmatmul.bf16.gmra.mxu0 %v1562
    %v1977 = vpop.f32.mrf.mxu0
    %v1978 = vadd.f32 %v1965, %v1977
    %v1979 = vpop.f32.mrf.mxu0
    %1980 = vdwg.mxu0
    %1981 = vmatpush.bf16.msra.mxu0 %v1882
    %1982 = vmatpush.bf16.msra.mxu0 %v1881
    %1983 = vmatpush.bf16.msra.mxu0 %v1880
    %1984 = vmatpush.bf16.msra.mxu0 %v1879
    %1985 = vmatpush.bf16.msra.mxu0 %v1878
    %1986 = vmatpush.bf16.msra.mxu0 %v1877
    %1987 = vmatpush.bf16.msra.mxu0 %v1876
    %1988 = vmatpush.bf16.msra.mxu0 %v1875
    %1989 = vmatmul.bf16.gmra.mxu0 %v1563
    %v1990 = vpop.f32.mrf.mxu0
    %v1991 = vadd.f32 %v1978, %v1990
    %v1992 = vpop.f32.mrf.mxu0
    %1993 = vdwg.mxu0
    %1994 = vmatpush.bf16.msra.mxu0 %v1890
    %1995 = vmatpush.bf16.msra.mxu0 %v1889
    %1996 = vmatpush.bf16.msra.mxu0 %v1888
    %1997 = vmatpush.bf16.msra.mxu0 %v1887
    %1998 = vmatpush.bf16.msra.mxu0 %v1886
    %1999 = vmatpush.bf16.msra.mxu0 %v1885
    %2000 = vmatpush.bf16.msra.mxu0 %v1884
    %2001 = vmatpush.bf16.msra.mxu0 %v1883
    %2002 = vmatmul.bf16.gmra.mxu0 %v1564
    %v2003 = vpop.f32.mrf.mxu0
    %v2004 = vadd.f32 %v1991, %v2003
    %v2005 = vpop.f32.mrf.mxu0
    %2006 = vdwg.mxu0
    %2007 = vmatpush.bf16.msra.mxu0 %v1898
    %2008 = vmatpush.bf16.msra.mxu0 %v1897
    %2009 = vmatpush.bf16.msra.mxu0 %v1896
    %2010 = vmatpush.bf16.msra.mxu0 %v1895
    %2011 = vmatpush.bf16.msra.mxu0 %v1894
    %2012 = vmatpush.bf16.msra.mxu0 %v1893
    %2013 = vmatpush.bf16.msra.mxu0 %v1892
    %2014 = vmatpush.bf16.msra.mxu0 %v1891
    %2015 = vmatmul.bf16.gmra.mxu0 %v1565
    %v2016 = vpop.f32.mrf.mxu0
    %v2017 = vadd.f32 %v2004, %v2016
    %v2018 = vpop.f32.mrf.mxu0
    %2019 = vdwg.mxu0
    %2020 = vmatpush.bf16.msra.mxu0 %v1906
    %2021 = vmatpush.bf16.msra.mxu0 %v1905
    %2022 = vmatpush.bf16.msra.mxu0 %v1904
    %2023 = vmatpush.bf16.msra.mxu0 %v1903
    %2024 = vmatpush.bf16.msra.mxu0 %v1902
    %2025 = vmatpush.bf16.msra.mxu0 %v1901
    %2026 = vmatpush.bf16.msra.mxu0 %v1900
    %2027 = vmatpush.bf16.msra.mxu0 %v1899
    %2028 = vmatmul.bf16.gmra.mxu0 %v1566
    %v2029 = vpop.f32.mrf.mxu0
    %v2030 = vadd.f32 %v2017, %v2029
    %v2031 = vpop.f32.mrf.mxu0
    %2032 = vdwg.mxu0
    %v2033 = vld [vmem:[%s1] sm:$0xff]
    %v2034 = vmul.f32 %v2033, %v2030
    %vm2035 = vcmask 23552
    %v2036 = vsel %vm2035, %v2034, 0.0
    %2037 = vadd.xlane.f32.xlu0 %v2036
    %v2038 = vpop.xlane.xlu0 %2037
    %2039 = vxpose.xlu0.b32.start [1/16] %v2038, 128
    %2040 = vxpose.xlu0.b32.cont [2/16] 0.0, 128
    %2041 = vxpose.xlu0.b32.cont [3/16] 0.0, 128
    %2042 = vxpose.xlu0.b32.cont [4/16] 0.0, 128
    %2043 = vxpose.xlu0.b32.cont [5/16] 0.0, 128
    %2044 = vxpose.xlu0.b32.cont [6/16] 0.0, 128
    %2045 = vxpose.xlu0.b32.cont [7/16] 0.0, 128
    %2046 = vxpose.xlu0.b32.cont [8/16] 0.0, 128
    %2047 = vxpose.xlu0.b32.cont [9/16] 0.0, 128
    %2048 = vxpose.xlu0.b32.cont [10/16] 0.0, 128
    %2049 = vxpose.xlu0.b32.cont [11/16] 0.0, 128
    %2050 = vxpose.xlu0.b32.cont [12/16] 0.0, 128
    %2051 = vxpose.xlu0.b32.cont [13/16] 0.0, 128
    %2052 = vxpose.xlu0.b32.cont [14/16] 0.0, 128
    %2053 = vxpose.xlu0.b32.cont [15/16] 0.0, 128
    %2054 = vxpose.xlu0.b32.end [16/16] 0.0, 128
    %v2055 = vpop.trf.xlu0
    %v2056 = vpop.trf.xlu0
    %v2057 = vpop.trf.xlu0
    %v2058 = vpop.trf.xlu0
    %v2059 = vpop.trf.xlu0
    %v2060 = vpop.trf.xlu0
    %v2061 = vpop.trf.xlu0
    %v2062 = vpop.trf.xlu0
    %v2063 = vpop.trf.xlu0
    %v2064 = vpop.trf.xlu0
    %v2065 = vpop.trf.xlu0
    %v2066 = vpop.trf.xlu0
    %v2067 = vpop.trf.xlu0
    %v2068 = vpop.trf.xlu0
    %v2069 = vpop.trf.xlu0
    %v2070 = vpop.trf.xlu0
    %vm2071 = vcmask 57344
    %2072 = vst.msk [vmem:[#allocation5] sm:$0x1] %vm2071, %v2055
    // Predicated region
    $region34: #{branched_control.1} parent=1 // pred_check
      _
    $region35: #{branched_control.1} parent=1 // pred_check_branch
      %2074 = sbr.rel (0) target = $region37
    $region36: #{branched_control.1} parent=1 // pred_region
      %2076 = vsyncadd [#allocation4], 0
      %s2078 = sshll.u32 [#allocation5], 4
      %s2079 = int_to_ptr.vmem [resolvable:$true] %s2078
      %s2080 = sshll.u32 %s7, 4
      %s2081 = int_to_ptr.hbm [resolvable:$true] %s2080
      %2083 = dma.vmem_to_hbm [thread:$0]  %s2079, 16, %s2081, [#allocation4]
    $region37: #{branched_control.1} parent=1 // pred_fallthru
      _
    // Predicated region
    $region38: #{branched_control.1} parent=1 // pred_check
      _
    $region39: #{branched_control.1} parent=1 // pred_check_branch
      %2085 = sbr.rel (0) target = $region41
    $region40: #{branched_control.1} parent=1 // pred_region
      %2087 = dma.done [#allocation4], 16
    $region41: #{branched_control.1} parent=1 // pred_fallthru
      _
    %2088 = vsyncpa [#allocation3], 1
    %2089 = vsyncpa [#allocation4], 1

</llo_original>
